<compile_context>
chip_gen: v6e
topology: v6e:2x2x1
jax: 0.10.0
libtpu: 0.0.40
codegen_flags: <defaults>
</compile_context>

<pallas_src>
import math

import jax
import jax.numpy as jnp
from jax.experimental import pallas as pl
from jax.experimental.pallas import tpu as pltpu


def _mha_kernel(x_ref, bias_ref, wq_ref, bq_ref, wk_ref, bk_ref, wv_ref, bv_ref,
                wo_ref, bo_ref, o_ref):
    num_heads = wq_ref.shape[0]
    seq, d_in = x_ref.shape

    # Present x to every head: (H, S, d_in) bf16 (broadcast only, no copies).
    xh = jnp.broadcast_to(x_ref[...], (num_heads, seq, d_in))

    # Head-batched projections on the MXU, f32 accumulation.
    # (1/sqrt(head_dim) is pre-folded into wq/bq by the wrapper.)
    q = jnp.einsum("hsd,hde->hse", xh, wq_ref[...],
                   preferred_element_type=jnp.float32) + bq_ref[...]
    k = jnp.einsum("hsd,hde->hse", xh, wk_ref[...],
                   preferred_element_type=jnp.float32) + bk_ref[...]
    v = jnp.einsum("hsd,hde->hse", xh, wv_ref[...],
                   preferred_element_type=jnp.float32) + bv_ref[...]

    # Scores for all heads in one batched contraction + additive causal bias.
    scores = jnp.einsum("hqe,hke->hqk",
                        q.astype(jnp.bfloat16), k.astype(jnp.bfloat16),
                        preferred_element_type=jnp.float32)
    scores = scores + bias_ref[...]          # (S, S) bias broadcasts over heads

    # Softmax in f32; reciprocal goes to the (otherwise idle) EUP slot.
    m = jnp.max(scores, axis=-1, keepdims=True)
    p = jnp.exp(scores - m)
    l = jnp.sum(p, axis=-1, keepdims=True)
    p = p * pl.reciprocal(l, approx=True)
    # TODO(synk): attention-weight dropout omitted (eval mode / p = 0).

    # Context + output projection, still head-batched.  The per-head out-proj
    # slices reduce the heads straight into d_out, so no concat / transpose is
    # ever needed inside the kernel.
    ctx = jnp.einsum("hqk,hke->hqe",
                     p.astype(jnp.bfloat16), v.astype(jnp.bfloat16),
                     preferred_element_type=jnp.float32)
    out_h = jnp.einsum("hse,heo->hso",
                       ctx.astype(jnp.bfloat16), wo_ref[...],
                       preferred_element_type=jnp.float32)
    out = jnp.sum(out_h, axis=0) + bo_ref[...]
    o_ref[...] = out.astype(o_ref.dtype)


def multi_headed_attention(x, params, *, num_heads):
    """x: (B, S, d_in) float32. params: dict of f32 weights/biases."""
    b, s_len, d_in = x.shape
    d_out = params["wq"].shape[1]
    assert d_out % num_heads == 0
    head_dim = d_out // num_heads
    scale = 1.0 / math.sqrt(head_dim)

    # ---- Wrapper-side layout & dtype prep (plain XLA, outside the kernel) ----
    x_bf = x.astype(jnp.bfloat16)

    def split_w(w):                  # (d_in, d_out) -> (H, d_in, head_dim)
        return jnp.transpose(w.reshape(w.shape[0], num_heads, head_dim), (1, 0, 2))

    def split_b(bias):               # (1, d_out) -> (H, 1, head_dim)
        return bias.reshape(num_heads, 1, head_dim)

    wq = split_w(params["wq"] * scale).astype(jnp.bfloat16)   # scale folded in
    bq = split_b(params["bq"] * scale)
    wk = split_w(params["wk"]).astype(jnp.bfloat16)
    bk = split_b(params["bk"])
    wv = split_w(params["wv"]).astype(jnp.bfloat16)
    bv = split_b(params["bv"])
    wo = params["wo"].reshape(num_heads, head_dim, d_out).astype(jnp.bfloat16)
    bo = params["bo"]

    # Additive causal bias, precomputed once (j > i masked).  -1e30 behaves
    # like -inf after the max-subtraction but is NaN-safe.
    rows = jnp.arange(s_len)
    causal_bias = jnp.where(rows[None, :] > rows[:, None],
                            jnp.float32(-1e30), jnp.float32(0.0))

    def const2(shape):
        return pl.BlockSpec(shape, lambda i: (0, 0))

    def const3(shape):
        return pl.BlockSpec(shape, lambda i: (0, 0, 0))

    return pl.pallas_call(
        _mha_kernel,
        out_shape=jax.ShapeDtypeStruct((b, s_len, d_out), x.dtype),
        grid_spec=pltpu.PrefetchScalarGridSpec(
            num_scalar_prefetch=0,
            grid=(b,),
            in_specs=[
                pl.BlockSpec((pl.Squeezed(), s_len, d_in), lambda i: (i, 0, 0)),  # x
                const2((s_len, s_len)),                                           # causal bias
                const3((num_heads, d_in, head_dim)),   # W_query (per head)
                const3((num_heads, 1, head_dim)),      # b_query
                const3((num_heads, d_in, head_dim)),   # W_key
                const3((num_heads, 1, head_dim)),      # b_key
                const3((num_heads, d_in, head_dim)),   # W_value
                const3((num_heads, 1, head_dim)),      # b_value
                const3((num_heads, head_dim, d_out)),  # out_proj W (per head)
                const2((1, d_out)),                    # out_proj b
            ],
            out_specs=pl.BlockSpec((pl.Squeezed(), s_len, d_out),
                                   lambda i: (i, 0, 0)),
        ),
        compiler_params=pltpu.CompilerParams(
            dimension_semantics=("parallel",)),
    )(x_bf, causal_bias, wq, bq, wk, bk, wv, bv, wo, bo)


def _reference(x, params, num_heads):
    """Pure-JAX f32 reference mirroring the PyTorch forward (eval mode)."""
    b, s_len, d_in = x.shape
    d_out = params["wq"].shape[1]
    hd = d_out // num_heads

    def lin(x_, w, bias):
        return x_ @ w + bias[0]

    q = lin(x, params["wq"], params["bq"]).reshape(b, s_len, num_heads, hd).transpose(0, 2, 1, 3)
    k = lin(x, params["wk"], params["bk"]).reshape(b, s_len, num_heads, hd).transpose(0, 2, 1, 3)
    v = lin(x, params["wv"], params["bv"]).reshape(b, s_len, num_heads, hd).transpose(0, 2, 1, 3)

    scores = jnp.einsum("bhqd,bhkd->bhqk", q, k) / jnp.sqrt(jnp.float32(hd))
    mask = jnp.triu(jnp.ones((s_len, s_len), dtype=bool), k=1)
    scores = jnp.where(mask, -jnp.inf, scores)
    w = jax.nn.softmax(scores, axis=-1)
    ctx = jnp.einsum("bhqk,bhkd->bhqd", w, v).transpose(0, 2, 1, 3).reshape(b, s_len, d_out)
    return ctx @ params["wo"] + params["bo"][0]


if __name__ == "__main__":
    # Module config: d_in = d_out = 32, context_length >= seq, dropout=0.0,
    # num_heads = 4, qkv_bias = True.
    B, S, D_IN, D_OUT, NUM_HEADS = 2, 8, 32, 32, 4

    key = jax.random.PRNGKey(0)
    keys = jax.random.split(key, 10)
    scale = 0.05
    params = {
        "wq": scale * jax.random.normal(keys[0], (D_IN, D_OUT), jnp.float32),
        "bq": scale * jax.random.normal(keys[1], (1, D_OUT), jnp.float32),
        "wk": scale * jax.random.normal(keys[2], (D_IN, D_OUT), jnp.float32),
        "bk": scale * jax.random.normal(keys[3], (1, D_OUT), jnp.float32),
        "wv": scale * jax.random.normal(keys[4], (D_IN, D_OUT), jnp.float32),
        "bv": scale * jax.random.normal(keys[5], (1, D_OUT), jnp.float32),
        "wo": scale * jax.random.normal(keys[6], (D_OUT, D_OUT), jnp.float32),
        "bo": scale * jax.random.normal(keys[7], (1, D_OUT), jnp.float32),
    }
    x = jax.random.normal(keys[8], (B, S, D_IN), jnp.float32)

    out = multi_headed_attention(x, params, num_heads=NUM_HEADS)
    out = jax.block_until_ready(out)

    ref = _reference(x, params, NUM_HEADS)
    assert out.shape == (B, S, D_OUT), out.shape
    # bf16 MXU operands + approx reciprocal -> compare against the f32
    # reference with a bf16-appropriate tolerance.
    max_err = float(jnp.max(jnp.abs(out - ref)))
    assert jnp.allclose(out, ref, atol=2e-2, rtol=2e-2), max_err

    print("KERNEL_OK")
</pallas_src>

<mosaic_0001>
module attributes {stable_mosaic.version = 11 : i64} {
  func.func @_mha_kernel(%arg0: i32, %arg1: memref<1x8x32xbf16, #tpu.memory_space<vmem>>, %arg2: memref<8x8xf32, #tpu.memory_space<vmem>>, %arg3: memref<4x32x8xbf16, #tpu.memory_space<vmem>>, %arg4: memref<4x1x8xf32, #tpu.memory_space<vmem>>, %arg5: memref<4x32x8xbf16, #tpu.memory_space<vmem>>, %arg6: memref<4x1x8xf32, #tpu.memory_space<vmem>>, %arg7: memref<4x32x8xbf16, #tpu.memory_space<vmem>>, %arg8: memref<4x1x8xf32, #tpu.memory_space<vmem>>, %arg9: memref<4x8x32xbf16, #tpu.memory_space<vmem>>, %arg10: memref<1x32xf32, #tpu.memory_space<vmem>>, %arg11: memref<1x8x32xf32, #tpu.memory_space<vmem>>) attributes {dimension_semantics = [#tpu.dimension_semantics<parallel>], iteration_bounds = array<i64: 2>, scalar_prefetch = 0 : i64, scratch_operands = 0 : i64, tpu.core_type = #tpu.core_type<tc>, window_params = [{transform_indices = @transform_0, window_bounds = array<i64: 1, 8, 32>}, {pipeline_mode = #tpu.pipeline_mode<synchronous>, transform_indices = @transform_1, window_bounds = array<i64: 8, 8>}, {pipeline_mode = #tpu.pipeline_mode<synchronous>, transform_indices = @transform_2, window_bounds = array<i64: 4, 32, 8>}, {pipeline_mode = #tpu.pipeline_mode<synchronous>, transform_indices = @transform_3, window_bounds = array<i64: 4, 1, 8>}, {pipeline_mode = #tpu.pipeline_mode<synchronous>, transform_indices = @transform_4, window_bounds = array<i64: 4, 32, 8>}, {pipeline_mode = #tpu.pipeline_mode<synchronous>, transform_indices = @transform_5, window_bounds = array<i64: 4, 1, 8>}, {pipeline_mode = #tpu.pipeline_mode<synchronous>, transform_indices = @transform_6, window_bounds = array<i64: 4, 32, 8>}, {pipeline_mode = #tpu.pipeline_mode<synchronous>, transform_indices = @transform_7, window_bounds = array<i64: 4, 1, 8>}, {pipeline_mode = #tpu.pipeline_mode<synchronous>, transform_indices = @transform_8, window_bounds = array<i64: 4, 8, 32>}, {pipeline_mode = #tpu.pipeline_mode<synchronous>, transform_indices = @transform_9, window_bounds = array<i64: 1, 32>}, {transform_indices = @transform_10, window_bounds = array<i64: 1, 8, 32>}]} {
    %c0 = arith.constant 0 : index
    %c0_0 = arith.constant 0 : index
    %c0_1 = arith.constant 0 : index
    %0 = vector.load %arg1[%c0, %c0_0, %c0_1] : memref<1x8x32xbf16, #tpu.memory_space<vmem>>, vector<1x8x32xbf16>
    %1 = vector.shape_cast %0 : vector<1x8x32xbf16> to vector<8x32xbf16>
    %2 = vector.shape_cast %1 : vector<8x32xbf16> to vector<1x8x32xbf16>
    %3 = vector.broadcast %2 : vector<1x8x32xbf16> to vector<4x8x32xbf16>
    %c0_2 = arith.constant 0 : index
    %c0_3 = arith.constant 0 : index
    %c0_4 = arith.constant 0 : index
    %4 = vector.load %arg3[%c0_2, %c0_3, %c0_4] : memref<4x32x8xbf16, #tpu.memory_space<vmem>>, vector<4x32x8xbf16>
    "tpu.trace_start"() <{level = 10 : i32, message = "hsd,hde->hse"}> : () -> ()
    %cst = arith.constant dense<0.000000e+00> : vector<4x8x8xf32>
    %5 = tpu.matmul %3, %4, %cst {dimension_numbers = #tpu.dot_dimension_numbers<[2], [1], [1], [2], [0, 0, 0, 1, 1, 2], [0], [0]>} : vector<4x8x32xbf16>, vector<4x32x8xbf16>, vector<4x8x8xf32> -> vector<4x8x8xf32>
    "tpu.trace_stop"() : () -> ()
    %c0_5 = arith.constant 0 : index
    %c0_6 = arith.constant 0 : index
    %c0_7 = arith.constant 0 : index
    %6 = vector.load %arg4[%c0_5, %c0_6, %c0_7] : memref<4x1x8xf32, #tpu.memory_space<vmem>>, vector<4x1x8xf32>
    %7 = vector.broadcast %6 : vector<4x1x8xf32> to vector<4x8x8xf32>
    %8 = arith.addf %5, %7 : vector<4x8x8xf32>
    %c0_8 = arith.constant 0 : index
    %c0_9 = arith.constant 0 : index
    %c0_10 = arith.constant 0 : index
    %9 = vector.load %arg5[%c0_8, %c0_9, %c0_10] : memref<4x32x8xbf16, #tpu.memory_space<vmem>>, vector<4x32x8xbf16>
    "tpu.trace_start"() <{level = 10 : i32, message = "hsd,hde->hse"}> : () -> ()
    %cst_11 = arith.constant dense<0.000000e+00> : vector<4x8x8xf32>
    %10 = tpu.matmul %3, %9, %cst_11 {dimension_numbers = #tpu.dot_dimension_numbers<[2], [1], [1], [2], [0, 0, 0, 1, 1, 2], [0], [0]>} : vector<4x8x32xbf16>, vector<4x32x8xbf16>, vector<4x8x8xf32> -> vector<4x8x8xf32>
    "tpu.trace_stop"() : () -> ()
    %c0_12 = arith.constant 0 : index
    %c0_13 = arith.constant 0 : index
    %c0_14 = arith.constant 0 : index
    %11 = vector.load %arg6[%c0_12, %c0_13, %c0_14] : memref<4x1x8xf32, #tpu.memory_space<vmem>>, vector<4x1x8xf32>
    %12 = vector.broadcast %11 : vector<4x1x8xf32> to vector<4x8x8xf32>
    %13 = arith.addf %10, %12 : vector<4x8x8xf32>
    %c0_15 = arith.constant 0 : index
    %c0_16 = arith.constant 0 : index
    %c0_17 = arith.constant 0 : index
    %14 = vector.load %arg7[%c0_15, %c0_16, %c0_17] : memref<4x32x8xbf16, #tpu.memory_space<vmem>>, vector<4x32x8xbf16>
    "tpu.trace_start"() <{level = 10 : i32, message = "hsd,hde->hse"}> : () -> ()
    %cst_18 = arith.constant dense<0.000000e+00> : vector<4x8x8xf32>
    %15 = tpu.matmul %3, %14, %cst_18 {dimension_numbers = #tpu.dot_dimension_numbers<[2], [1], [1], [2], [0, 0, 0, 1, 1, 2], [0], [0]>} : vector<4x8x32xbf16>, vector<4x32x8xbf16>, vector<4x8x8xf32> -> vector<4x8x8xf32>
    "tpu.trace_stop"() : () -> ()
    %c0_19 = arith.constant 0 : index
    %c0_20 = arith.constant 0 : index
    %c0_21 = arith.constant 0 : index
    %16 = vector.load %arg8[%c0_19, %c0_20, %c0_21] : memref<4x1x8xf32, #tpu.memory_space<vmem>>, vector<4x1x8xf32>
    %17 = vector.broadcast %16 : vector<4x1x8xf32> to vector<4x8x8xf32>
    %18 = arith.addf %15, %17 : vector<4x8x8xf32>
    %19 = arith.truncf %8 : vector<4x8x8xf32> to vector<4x8x8xbf16>
    %20 = arith.truncf %13 : vector<4x8x8xf32> to vector<4x8x8xbf16>
    "tpu.trace_start"() <{level = 10 : i32, message = "hqe,hke->hqk"}> : () -> ()
    %cst_22 = arith.constant dense<0.000000e+00> : vector<4x8x8xf32>
    %21 = tpu.matmul %19, %20, %cst_22 {dimension_numbers = #tpu.dot_dimension_numbers<[2], [2], [1], [1], [0, 0, 0, 1, 1, 1], [0], [0]>} : vector<4x8x8xbf16>, vector<4x8x8xbf16>, vector<4x8x8xf32> -> vector<4x8x8xf32>
    "tpu.trace_stop"() : () -> ()
    %c0_23 = arith.constant 0 : index
    %c0_24 = arith.constant 0 : index
    %22 = vector.load %arg2[%c0_23, %c0_24] : memref<8x8xf32, #tpu.memory_space<vmem>>, vector<8x8xf32>
    %23 = vector.shape_cast %22 : vector<8x8xf32> to vector<1x8x8xf32>
    %24 = vector.broadcast %23 : vector<1x8x8xf32> to vector<4x8x8xf32>
    %25 = arith.addf %21, %24 : vector<4x8x8xf32>
    %cst_25 = arith.constant dense<0xFF800000> : vector<4x8xf32>
    %26 = vector.multi_reduction <maximumf>, %25, %cst_25 [2] : vector<4x8x8xf32> to vector<4x8xf32>
    %27 = vector.shape_cast %26 : vector<4x8xf32> to vector<4x8x1xf32>
    %28 = vector.broadcast %27 : vector<4x8x1xf32> to vector<4x8x8xf32>
    %29 = arith.subf %25, %28 : vector<4x8x8xf32>
    %30 = math.exp %29 : vector<4x8x8xf32>
    %cst_26 = arith.constant dense<0.000000e+00> : vector<4x8xf32>
    %31 = vector.multi_reduction <add>, %30, %cst_26 [2] : vector<4x8x8xf32> to vector<4x8xf32>
    %32 = vector.shape_cast %31 : vector<4x8xf32> to vector<4x8x1xf32>
    %33 = tpu.reciprocal %32 {approx = true} : vector<4x8x1xf32> -> vector<4x8x1xf32>
    %34 = vector.broadcast %33 : vector<4x8x1xf32> to vector<4x8x8xf32>
    %35 = arith.mulf %30, %34 : vector<4x8x8xf32>
    %36 = arith.truncf %35 : vector<4x8x8xf32> to vector<4x8x8xbf16>
    %37 = arith.truncf %18 : vector<4x8x8xf32> to vector<4x8x8xbf16>
    "tpu.trace_start"() <{level = 10 : i32, message = "hqk,hke->hqe"}> : () -> ()
    %cst_27 = arith.constant dense<0.000000e+00> : vector<4x8x8xf32>
    %38 = tpu.matmul %36, %37, %cst_27 {dimension_numbers = #tpu.dot_dimension_numbers<[2], [1], [1], [2], [0, 0, 0, 1, 1, 2], [0], [0]>} : vector<4x8x8xbf16>, vector<4x8x8xbf16>, vector<4x8x8xf32> -> vector<4x8x8xf32>
    "tpu.trace_stop"() : () -> ()
    %39 = arith.truncf %38 : vector<4x8x8xf32> to vector<4x8x8xbf16>
    %c0_28 = arith.constant 0 : index
    %c0_29 = arith.constant 0 : index
    %c0_30 = arith.constant 0 : index
    %40 = vector.load %arg9[%c0_28, %c0_29, %c0_30] : memref<4x8x32xbf16, #tpu.memory_space<vmem>>, vector<4x8x32xbf16>
    "tpu.trace_start"() <{level = 10 : i32, message = "hse,heo->hso"}> : () -> ()
    %cst_31 = arith.constant dense<0.000000e+00> : vector<4x8x32xf32>
    %41 = tpu.matmul %39, %40, %cst_31 {dimension_numbers = #tpu.dot_dimension_numbers<[2], [1], [1], [2], [0, 0, 0, 1, 1, 2], [0], [0]>} : vector<4x8x8xbf16>, vector<4x8x32xbf16>, vector<4x8x32xf32> -> vector<4x8x32xf32>
    "tpu.trace_stop"() : () -> ()
    %cst_32 = arith.constant dense<0.000000e+00> : vector<8x32xf32>
    %42 = vector.multi_reduction <add>, %41, %cst_32 [0] : vector<4x8x32xf32> to vector<8x32xf32>
    %c0_33 = arith.constant 0 : index
    %c0_34 = arith.constant 0 : index
    %43 = vector.load %arg10[%c0_33, %c0_34] : memref<1x32xf32, #tpu.memory_space<vmem>>, vector<1x32xf32>
    %44 = vector.broadcast %43 : vector<1x32xf32> to vector<8x32xf32>
    %45 = arith.addf %42, %44 : vector<8x32xf32>
    %c0_35 = arith.constant 0 : index
    %c0_36 = arith.constant 0 : index
    %c0_37 = arith.constant 0 : index
    %46 = vector.load %arg11[%c0_35, %c0_36, %c0_37] : memref<1x8x32xf32, #tpu.memory_space<vmem>>, vector<1x8x32xf32>
    %47 = vector.shape_cast %46 : vector<1x8x32xf32> to vector<8x32xf32>
    %48 = vector.shape_cast %45 : vector<8x32xf32> to vector<1x8x32xf32>
    tpu.vector_store %arg11[%c0_35, %c0_36, %c0_37], %48 {strides = array<i32>} : memref<1x8x32xf32, #tpu.memory_space<vmem>>, vector<1x8x32xf32>,
    return
  }
  func.func @transform_0(%arg0: i32) -> (i32, i32, i32) {
    %c0_i32 = arith.constant 0 : i32
    %c0_i32_0 = arith.constant 0 : i32
    %c0_i32_1 = arith.constant 0 : i32
    return %arg0, %c0_i32, %c0_i32_0 : i32, i32, i32
  }
  func.func @transform_1(%arg0: i32) -> (i32, i32) {
    %c0_i32 = arith.constant 0 : i32
    %c0_i32_0 = arith.constant 0 : i32
    %c0_i32_1 = arith.constant 0 : i32
    return %c0_i32, %c0_i32_0 : i32, i32
  }
  func.func @transform_2(%arg0: i32) -> (i32, i32, i32) {
    %c0_i32 = arith.constant 0 : i32
    %c0_i32_0 = arith.constant 0 : i32
    %c0_i32_1 = arith.constant 0 : i32
    %c0_i32_2 = arith.constant 0 : i32
    return %c0_i32, %c0_i32_0, %c0_i32_1 : i32, i32, i32
  }
  func.func @transform_3(%arg0: i32) -> (i32, i32, i32) {
    %c0_i32 = arith.constant 0 : i32
    %c0_i32_0 = arith.constant 0 : i32
    %c0_i32_1 = arith.constant 0 : i32
    %c0_i32_2 = arith.constant 0 : i32
    return %c0_i32, %c0_i32_0, %c0_i32_1 : i32, i32, i32
  }
  func.func @transform_4(%arg0: i32) -> (i32, i32, i32) {
    %c0_i32 = arith.constant 0 : i32
    %c0_i32_0 = arith.constant 0 : i32
    %c0_i32_1 = arith.constant 0 : i32
    %c0_i32_2 = arith.constant 0 : i32
    return %c0_i32, %c0_i32_0, %c0_i32_1 : i32, i32, i32
  }
  func.func @transform_5(%arg0: i32) -> (i32, i32, i32) {
    %c0_i32 = arith.constant 0 : i32
    %c0_i32_0 = arith.constant 0 : i32
    %c0_i32_1 = arith.constant 0 : i32
    %c0_i32_2 = arith.constant 0 : i32
    return %c0_i32, %c0_i32_0, %c0_i32_1 : i32, i32, i32
  }
  func.func @transform_6(%arg0: i32) -> (i32, i32, i32) {
    %c0_i32 = arith.constant 0 : i32
    %c0_i32_0 = arith.constant 0 : i32
    %c0_i32_1 = arith.constant 0 : i32
    %c0_i32_2 = arith.constant 0 : i32
    return %c0_i32, %c0_i32_0, %c0_i32_1 : i32, i32, i32
  }
  func.func @transform_7(%arg0: i32) -> (i32, i32, i32) {
    %c0_i32 = arith.constant 0 : i32
    %c0_i32_0 = arith.constant 0 : i32
    %c0_i32_1 = arith.constant 0 : i32
    %c0_i32_2 = arith.constant 0 : i32
    return %c0_i32, %c0_i32_0, %c0_i32_1 : i32, i32, i32
  }
  func.func @transform_8(%arg0: i32) -> (i32, i32, i32) {
    %c0_i32 = arith.constant 0 : i32
    %c0_i32_0 = arith.constant 0 : i32
    %c0_i32_1 = arith.constant 0 : i32
    %c0_i32_2 = arith.constant 0 : i32
    return %c0_i32, %c0_i32_0, %c0_i32_1 : i32, i32, i32
  }
  func.func @transform_9(%arg0: i32) -> (i32, i32) {
    %c0_i32 = arith.constant 0 : i32
    %c0_i32_0 = arith.constant 0 : i32
    %c0_i32_1 = arith.constant 0 : i32
    return %c0_i32, %c0_i32_0 : i32, i32
  }
  func.func @transform_10(%arg0: i32) -> (i32, i32, i32) {
    %c0_i32 = arith.constant 0 : i32
    %c0_i32_0 = arith.constant 0 : i32
    %c0_i32_1 = arith.constant 0 : i32
    return %arg0, %c0_i32, %c0_i32_0 : i32, i32, i32
  }
}

</mosaic_0001>

<llo_original>
// kernel: tpu_custom_call.1
$region0: #{tpu_custom_call.1}
  #allocation0 [shape = 'u32[]', space=smem, size = 0x4, offset = 0x4, fixed_abs, tag = 'smem constant byte address 0x4 - core index']
  #allocation1 [shape = 'u32[144,128]{1,0:T(1,128)}', space=vmem, size = 0x12000, scoped, tag = 'internal scratch']
  %s0 = inlined_call_operand.vmem [shape: bf16[2,8,32], index: 0, kind: input, shape index: {}]
  %s1 = inlined_call_operand.vmem [shape: f32[8,8], index: 1, kind: input, shape index: {}]
  %s2 = inlined_call_operand.vmem [shape: bf16[4,32,8], index: 2, kind: input, shape index: {}]
  %s3 = inlined_call_operand.vmem [shape: f32[4,1,8], index: 3, kind: input, shape index: {}]
  %s4 = inlined_call_operand.vmem [shape: bf16[4,32,8], index: 4, kind: input, shape index: {}]
  %s5 = inlined_call_operand.vmem [shape: f32[4,1,8], index: 5, kind: input, shape index: {}]
  %s6 = inlined_call_operand.vmem [shape: bf16[4,32,8], index: 6, kind: input, shape index: {}]
  %s7 = inlined_call_operand.vmem [shape: f32[4,1,8], index: 7, kind: input, shape index: {}]
  %s8 = inlined_call_operand.vmem [shape: bf16[4,8,32], index: 8, kind: input, shape index: {}]
  %s9 = inlined_call_operand.vmem [shape: f32[1,32], index: 9, kind: input, shape index: {}]
  %s10 = inlined_call_operand.hbm [shape: f32[2,8,32], index: 10, kind: output, shape index: {}]
  %s11 = sld [smem:[#allocation0]]
  $region73: #{tpu_custom_call.1} parent=0
    _
  %s13 = ssub.s32 1, %s11
  %s14 = scalar_select 0, %s13, %s11
  $region1: #{tpu_custom_call.1} parent=0
    #allocation2 [shape = 'u8[8192]{0}', space=vmem, size = 0x2000, scoped, tag = 'output window, operand 0']
    #allocation3 [shape = 's32[2]{0}', space=sflag, size = 0x8, scoped, tag = 'scoped memory for tpu_custom_call.1']
    %15 = vsyncpa [#allocation3], 0
    %s16 = scalar_lea.sflag [#allocation3], 1
    %17 = vsyncpa %s16, 0
    loop: start=0, step=1, limit=4
    $region2: #{tpu_custom_call.1} parent=1 // loop_pre_header
      _
    $region3: #{tpu_custom_call.1} parent=1 // loop_header
      %s19 = sphi 0, %s23
      %p20 = scmp.ge.s32.totalorder %s19, 4
      %s29 = sphi 0, %s31
      %s32 = sphi 0, %s29
      %s33 = sphi 0, %s32
      %s49 = sphi 0, %s33
      %s53 = sphi 0, %s53
      %s55 = sphi 0, %s53
      %s56 = sphi 0, %s55
      %s70 = sphi 0, %s56
      %s74 = sphi 0, %s74
      %s76 = sphi 0, %s74
      %s77 = sphi 0, %s76
      %s91 = sphi 0, %s77
      %s95 = sphi 0, %s95
      %s97 = sphi 0, %s95
      %s98 = sphi 0, %s97
      %s112 = sphi 0, %s98
      %s116 = sphi 0, %s116
      %s118 = sphi 0, %s116
      %s119 = sphi 0, %s118
      %s133 = sphi 0, %s119
      %s137 = sphi 0, %s137
      %s139 = sphi 0, %s137
      %s140 = sphi 0, %s139
      %s154 = sphi 0, %s140
      %s158 = sphi 0, %s158
      %s160 = sphi 0, %s158
      %s161 = sphi 0, %s160
      %s175 = sphi 0, %s161
      %s179 = sphi 0, %s179
      %s181 = sphi 0, %s179
      %s182 = sphi 0, %s181
      %s196 = sphi 0, %s182
      %s200 = sphi 0, %s200
      %s202 = sphi 0, %s200
      %s203 = sphi 0, %s202
      %s217 = sphi 0, %s203
      %s221 = sphi 0, %s221
      %s223 = sphi 0, %s221
      %s224 = sphi 0, %s223
      %s238 = sphi 0, %s224
      %s244 = sphi 0, %s246
      %s247 = sphi 0, %s244
      %s248 = sphi 0, %s247
      %s264 = sphi 0, %s248
    $region4: #{tpu_custom_call.1} parent=1 // loop_header_branch
      %22 = sbr.rel (%p20) target = $region8
    $region5: #{tpu_custom_call.1} parent=1 // loop_body
      %s24 = ssub.s32 %s19, 1
      %s25 = ssub.s32 %s19, 2
      %s26 = sadd.s32 %s19, 1
      %s27 = ssub.s32 %s19, %s26
      %p28 = scmp.eq.s32.totalorder %s27, 0
      %s30 = sadd.s32 %s29, 1
      %s31 = scalar_select %p28, %s29, %s30
      %p34 = pneg %p28
      %p35 = scmp.eq.s32.totalorder %s19, 1
      %p36 = por %p34, %p35
      %p37 = scmp.ne.s32.totalorder %s29, %s32
      %p38 = scmp.eq.s32.totalorder %s19, 0
      %p39 = por %p37, %p38
      %p40 = scmp.ne.s32.totalorder %s29, %s32
      %p41 = scmp.eq.s32.totalorder %s24, 1
      %p42 = por %p40, %p41
      %p43 = scmp.ne.s32.totalorder %s32, %s33
      %p44 = scmp.eq.s32.totalorder %s24, 0
      %p45 = por %p43, %p44
      %p46 = scmp.ne.s32.totalorder %s32, %s33
      %p47 = scmp.eq.s32.totalorder %s25, 1
      %p48 = por %p46, %p47
      %p50 = scmp.ne.s32.totalorder %s33, %s49
      %p51 = scmp.eq.s32.totalorder %s25, 0
      %p52 = por %p50, %p51
      %s54 = sadd.s32 %s53, 1
      %p57 = scmp.eq.s32.totalorder %s19, 1
      %p58 = scmp.ne.s32.totalorder %s53, %s55
      %p59 = scmp.eq.s32.totalorder %s19, 0
      %p60 = por %p58, %p59
      %p61 = scmp.ne.s32.totalorder %s53, %s55
      %p62 = scmp.eq.s32.totalorder %s24, 1
      %p63 = por %p61, %p62
      %p64 = scmp.ne.s32.totalorder %s55, %s56
      %p65 = scmp.eq.s32.totalorder %s24, 0
      %p66 = por %p64, %p65
      %p67 = scmp.ne.s32.totalorder %s55, %s56
      %p68 = scmp.eq.s32.totalorder %s25, 1
      %p69 = por %p67, %p68
      %p71 = scmp.ne.s32.totalorder %s56, %s70
      %p72 = scmp.eq.s32.totalorder %s25, 0
      %p73 = por %p71, %p72
      %s75 = sadd.s32 %s74, 1
      %p78 = scmp.eq.s32.totalorder %s19, 1
      %p79 = scmp.ne.s32.totalorder %s74, %s76
      %p80 = scmp.eq.s32.totalorder %s19, 0
      %p81 = por %p79, %p80
      %p82 = scmp.ne.s32.totalorder %s74, %s76
      %p83 = scmp.eq.s32.totalorder %s24, 1
      %p84 = por %p82, %p83
      %p85 = scmp.ne.s32.totalorder %s76, %s77
      %p86 = scmp.eq.s32.totalorder %s24, 0
      %p87 = por %p85, %p86
      %p88 = scmp.ne.s32.totalorder %s76, %s77
      %p89 = scmp.eq.s32.totalorder %s25, 1
      %p90 = por %p88, %p89
      %p92 = scmp.ne.s32.totalorder %s77, %s91
      %p93 = scmp.eq.s32.totalorder %s25, 0
      %p94 = por %p92, %p93
      %s96 = sadd.s32 %s95, 1
      %p99 = scmp.eq.s32.totalorder %s19, 1
      %p100 = scmp.ne.s32.totalorder %s95, %s97
      %p101 = scmp.eq.s32.totalorder %s19, 0
      %p102 = por %p100, %p101
      %p103 = scmp.ne.s32.totalorder %s95, %s97
      %p104 = scmp.eq.s32.totalorder %s24, 1
      %p105 = por %p103, %p104
      %p106 = scmp.ne.s32.totalorder %s97, %s98
      %p107 = scmp.eq.s32.totalorder %s24, 0
      %p108 = por %p106, %p107
      %p109 = scmp.ne.s32.totalorder %s97, %s98
      %p110 = scmp.eq.s32.totalorder %s25, 1
      %p111 = por %p109, %p110
      %p113 = scmp.ne.s32.totalorder %s98, %s112
      %p114 = scmp.eq.s32.totalorder %s25, 0
      %p115 = por %p113, %p114
      %s117 = sadd.s32 %s116, 1
      %p120 = scmp.eq.s32.totalorder %s19, 1
      %p121 = scmp.ne.s32.totalorder %s116, %s118
      %p122 = scmp.eq.s32.totalorder %s19, 0
      %p123 = por %p121, %p122
      %p124 = scmp.ne.s32.totalorder %s116, %s118
      %p125 = scmp.eq.s32.totalorder %s24, 1
      %p126 = por %p124, %p125
      %p127 = scmp.ne.s32.totalorder %s118, %s119
      %p128 = scmp.eq.s32.totalorder %s24, 0
      %p129 = por %p127, %p128
      %p130 = scmp.ne.s32.totalorder %s118, %s119
      %p131 = scmp.eq.s32.totalorder %s25, 1
      %p132 = por %p130, %p131
      %p134 = scmp.ne.s32.totalorder %s119, %s133
      %p135 = scmp.eq.s32.totalorder %s25, 0
      %p136 = por %p134, %p135
      %s138 = sadd.s32 %s137, 1
      %p141 = scmp.eq.s32.totalorder %s19, 1
      %p142 = scmp.ne.s32.totalorder %s137, %s139
      %p143 = scmp.eq.s32.totalorder %s19, 0
      %p144 = por %p142, %p143
      %p145 = scmp.ne.s32.totalorder %s137, %s139
      %p146 = scmp.eq.s32.totalorder %s24, 1
      %p147 = por %p145, %p146
      %p148 = scmp.ne.s32.totalorder %s139, %s140
      %p149 = scmp.eq.s32.totalorder %s24, 0
      %p150 = por %p148, %p149
      %p151 = scmp.ne.s32.totalorder %s139, %s140
      %p152 = scmp.eq.s32.totalorder %s25, 1
      %p153 = por %p151, %p152
      %p155 = scmp.ne.s32.totalorder %s140, %s154
      %p156 = scmp.eq.s32.totalorder %s25, 0
      %p157 = por %p155, %p156
      %s159 = sadd.s32 %s158, 1
      %p162 = scmp.eq.s32.totalorder %s19, 1
      %p163 = scmp.ne.s32.totalorder %s158, %s160
      %p164 = scmp.eq.s32.totalorder %s19, 0
      %p165 = por %p163, %p164
      %p166 = scmp.ne.s32.totalorder %s158, %s160
      %p167 = scmp.eq.s32.totalorder %s24, 1
      %p168 = por %p166, %p167
      %p169 = scmp.ne.s32.totalorder %s160, %s161
      %p170 = scmp.eq.s32.totalorder %s24, 0
      %p171 = por %p169, %p170
      %p172 = scmp.ne.s32.totalorder %s160, %s161
      %p173 = scmp.eq.s32.totalorder %s25, 1
      %p174 = por %p172, %p173
      %p176 = scmp.ne.s32.totalorder %s161, %s175
      %p177 = scmp.eq.s32.totalorder %s25, 0
      %p178 = por %p176, %p177
      %s180 = sadd.s32 %s179, 1
      %p183 = scmp.eq.s32.totalorder %s19, 1
      %p184 = scmp.ne.s32.totalorder %s179, %s181
      %p185 = scmp.eq.s32.totalorder %s19, 0
      %p186 = por %p184, %p185
      %p187 = scmp.ne.s32.totalorder %s179, %s181
      %p188 = scmp.eq.s32.totalorder %s24, 1
      %p189 = por %p187, %p188
      %p190 = scmp.ne.s32.totalorder %s181, %s182
      %p191 = scmp.eq.s32.totalorder %s24, 0
      %p192 = por %p190, %p191
      %p193 = scmp.ne.s32.totalorder %s181, %s182
      %p194 = scmp.eq.s32.totalorder %s25, 1
      %p195 = por %p193, %p194
      %p197 = scmp.ne.s32.totalorder %s182, %s196
      %p198 = scmp.eq.s32.totalorder %s25, 0
      %p199 = por %p197, %p198
      %s201 = sadd.s32 %s200, 1
      %p204 = scmp.eq.s32.totalorder %s19, 1
      %p205 = scmp.ne.s32.totalorder %s200, %s202
      %p206 = scmp.eq.s32.totalorder %s19, 0
      %p207 = por %p205, %p206
      %p208 = scmp.ne.s32.totalorder %s200, %s202
      %p209 = scmp.eq.s32.totalorder %s24, 1
      %p210 = por %p208, %p209
      %p211 = scmp.ne.s32.totalorder %s202, %s203
      %p212 = scmp.eq.s32.totalorder %s24, 0
      %p213 = por %p211, %p212
      %p214 = scmp.ne.s32.totalorder %s202, %s203
      %p215 = scmp.eq.s32.totalorder %s25, 1
      %p216 = por %p214, %p215
      %p218 = scmp.ne.s32.totalorder %s203, %s217
      %p219 = scmp.eq.s32.totalorder %s25, 0
      %p220 = por %p218, %p219
      %s222 = sadd.s32 %s221, 1
      %p225 = scmp.eq.s32.totalorder %s19, 1
      %p226 = scmp.ne.s32.totalorder %s221, %s223
      %p227 = scmp.eq.s32.totalorder %s19, 0
      %p228 = por %p226, %p227
      %p229 = scmp.ne.s32.totalorder %s221, %s223
      %p230 = scmp.eq.s32.totalorder %s24, 1
      %p231 = por %p229, %p230
      %p232 = scmp.ne.s32.totalorder %s223, %s224
      %p233 = scmp.eq.s32.totalorder %s24, 0
      %p234 = por %p232, %p233
      %p235 = scmp.ne.s32.totalorder %s223, %s224
      %p236 = scmp.eq.s32.totalorder %s25, 1
      %p237 = por %p235, %p236
      %p239 = scmp.ne.s32.totalorder %s224, %s238
      %p240 = scmp.eq.s32.totalorder %s25, 0
      %p241 = por %p239, %p240
      %s242 = ssub.s32 %s19, %s26
      %p243 = scmp.eq.s32.totalorder %s242, 0
      %s245 = sadd.s32 %s244, 1
      %s246 = scalar_select %p243, %s244, %s245
      %p249 = pneg %p243
      %p250 = scmp.eq.s32.totalorder %s19, 1
      %p251 = por %p249, %p250
      %p252 = scmp.ne.s32.totalorder %s244, %s247
      %p253 = scmp.eq.s32.totalorder %s19, 0
      %p254 = por %p252, %p253
      %p255 = scmp.ne.s32.totalorder %s244, %s247
      %p256 = scmp.eq.s32.totalorder %s24, 1
      %p257 = por %p255, %p256
      %p258 = scmp.ne.s32.totalorder %s247, %s248
      %p259 = scmp.eq.s32.totalorder %s24, 0
      %p260 = por %p258, %p259
      %p261 = scmp.ne.s32.totalorder %s247, %s248
      %p262 = scmp.eq.s32.totalorder %s25, 1
      %p263 = por %p261, %p262
      %p265 = scmp.ne.s32.totalorder %s248, %s264
      %p266 = scmp.eq.s32.totalorder %s25, 0
      %p267 = por %p265, %p266
      %p268 = scmp.le.s32.totalorder 1, %s19
      %p269 = scmp.lt.s32.totalorder %s19, 3
      %p270 = pnand %p268, %p269
      %p271 = pneg %p270
      // Predicated region
      $region9: #{tpu_custom_call.1} parent=5 // pred_check
        _
      $region10: #{tpu_custom_call.1} parent=5 // pred_check_branch
        %273 = sbr.rel (%p270) target = $region12
      $region11: #{tpu_custom_call.1} parent=5 // pred_region
        %s274 = ssub.s32 %s19, 1
        // Predicated region
        $region13: #{tpu_custom_call.1} parent=11 // pred_check
          %p275 = pneg %p66
        $region14: #{tpu_custom_call.1} parent=11 // pred_check_branch
          %277 = sbr.rel (%p275) target = $region16
        $region15: #{tpu_custom_call.1} parent=11 // pred_region
          _
        $region16: #{tpu_custom_call.1} parent=11 // pred_fallthru
          _
        // Predicated region
        $region17: #{tpu_custom_call.1} parent=11 // pred_check
          %p278 = pneg %p87
        $region18: #{tpu_custom_call.1} parent=11 // pred_check_branch
          %280 = sbr.rel (%p278) target = $region20
        $region19: #{tpu_custom_call.1} parent=11 // pred_region
          _
        $region20: #{tpu_custom_call.1} parent=11 // pred_fallthru
          _
        // Predicated region
        $region21: #{tpu_custom_call.1} parent=11 // pred_check
          %p281 = pneg %p108
        $region22: #{tpu_custom_call.1} parent=11 // pred_check_branch
          %283 = sbr.rel (%p281) target = $region24
        $region23: #{tpu_custom_call.1} parent=11 // pred_region
          _
        $region24: #{tpu_custom_call.1} parent=11 // pred_fallthru
          _
        // Predicated region
        $region25: #{tpu_custom_call.1} parent=11 // pred_check
          %p284 = pneg %p129
        $region26: #{tpu_custom_call.1} parent=11 // pred_check_branch
          %286 = sbr.rel (%p284) target = $region28
        $region27: #{tpu_custom_call.1} parent=11 // pred_region
          _
        $region28: #{tpu_custom_call.1} parent=11 // pred_fallthru
          _
        // Predicated region
        $region29: #{tpu_custom_call.1} parent=11 // pred_check
          %p287 = pneg %p150
        $region30: #{tpu_custom_call.1} parent=11 // pred_check_branch
          %289 = sbr.rel (%p287) target = $region32
        $region31: #{tpu_custom_call.1} parent=11 // pred_region
          _
        $region32: #{tpu_custom_call.1} parent=11 // pred_fallthru
          _
        // Predicated region
        $region33: #{tpu_custom_call.1} parent=11 // pred_check
          %p290 = pneg %p171
        $region34: #{tpu_custom_call.1} parent=11 // pred_check_branch
          %292 = sbr.rel (%p290) target = $region36
        $region35: #{tpu_custom_call.1} parent=11 // pred_region
          _
        $region36: #{tpu_custom_call.1} parent=11 // pred_fallthru
          _
        // Predicated region
        $region37: #{tpu_custom_call.1} parent=11 // pred_check
          %p293 = pneg %p192
        $region38: #{tpu_custom_call.1} parent=11 // pred_check_branch
          %295 = sbr.rel (%p293) target = $region40
        $region39: #{tpu_custom_call.1} parent=11 // pred_region
          _
        $region40: #{tpu_custom_call.1} parent=11 // pred_fallthru
          _
        // Predicated region
        $region41: #{tpu_custom_call.1} parent=11 // pred_check
          %p296 = pneg %p213
        $region42: #{tpu_custom_call.1} parent=11 // pred_check_branch
          %298 = sbr.rel (%p296) target = $region44
        $region43: #{tpu_custom_call.1} parent=11 // pred_region
          _
        $region44: #{tpu_custom_call.1} parent=11 // pred_fallthru
          _
        // Predicated region
        $region45: #{tpu_custom_call.1} parent=11 // pred_check
          %p299 = pneg %p234
        $region46: #{tpu_custom_call.1} parent=11 // pred_check_branch
          %301 = sbr.rel (%p299) target = $region48
        $region47: #{tpu_custom_call.1} parent=11 // pred_region
          _
        $region48: #{tpu_custom_call.1} parent=11 // pred_fallthru
          _
      $region12: #{tpu_custom_call.1} parent=5 // pred_fallthru
        _
      %p302 = scmp.lt.s32.totalorder %s19, 2
      // Predicated region
      $region49: #{tpu_custom_call.1} parent=5 // pred_check
        %p303 = pneg %p302
      $region50: #{tpu_custom_call.1} parent=5 // pred_check_branch
        %305 = sbr.rel (%p303) target = $region52
      $region51: #{tpu_custom_call.1} parent=5 // pred_region
        // Predicated region
        $region53: #{tpu_custom_call.1} parent=51 // pred_check
          %p306 = pneg %p39
        $region54: #{tpu_custom_call.1} parent=51 // pred_check_branch
          %308 = sbr.rel (%p306) target = $region56
        $region55: #{tpu_custom_call.1} parent=51 // pred_region
          %p309 = scmp.lt.s32.totalorder %s19, 1
          %s310 = scalar_select %p309, %s19, 1
          %s311 = smul.addr %s310, 4
          %s312 = scalar_lea.vmem %s0, %s311
        $region56: #{tpu_custom_call.1} parent=51 // pred_fallthru
          _
      $region52: #{tpu_custom_call.1} parent=5 // pred_fallthru
        _
      %p313 = scmp.le.s32.totalorder 1, %s19
      %p314 = scmp.lt.s32.totalorder %s19, 3
      %p315 = pnand %p313, %p314
      %p316 = pneg %p315
      // Predicated region
      $region57: #{tpu_custom_call.1} parent=5 // pred_check
        _
      $region58: #{tpu_custom_call.1} parent=5 // pred_check_branch
        %318 = sbr.rel (%p315) target = $region60
      $region59: #{tpu_custom_call.1} parent=5 // pred_region
        %s319 = ssub.s32 %s19, 1
        %p320 = scmp.lt.s32.totalorder %s24, 1
        %s321 = scalar_select %p320, %s24, 1
        %s322 = smul.addr %s321, 4
        %s323 = scalar_lea.vmem %s0, %s322
        %p324 = pneg %p45
        %p325 = pneg %p42
        %p326 = pneg %p66
        %p327 = pneg %p63
        %p328 = pneg %p87
        %p329 = pneg %p84
        %p330 = pneg %p108
        %p331 = pneg %p105
        %p332 = pneg %p129
        %p333 = pneg %p126
        %p334 = pneg %p150
        %p335 = pneg %p147
        %p336 = pneg %p171
        %p337 = pneg %p168
        %p338 = pneg %p192
        %p339 = pneg %p189
        %p340 = pneg %p213
        %p341 = pneg %p210
        %p342 = pneg %p234
        %p343 = pneg %p231
        %p344 = pneg %p260
        %p345 = pneg %p257
        %s346 = sand.u32 %s247, 1
        %s347 = scalar_lea.sflag [#allocation3], %s346
        %s348 = sand.u32 %s247, 1
        %s349 = smul.addr %s348, 8
        %s350 = scalar_lea.vmem [#allocation2], %s349
        %p351 = scmp.lt.s32.totalorder %s24, 1
        %s352 = scalar_select %p351, %s24, 1
        %s353 = smul.addr %s352, 4
        %s354 = scalar_lea.vmem %s0, %s353
        %v356 = vld [vmem:[%s354] sm:$0xf]
        %v357 = vld [vmem:[%s2] sm:$0xf]
        %v358 = vld [vmem:[%s2 + $0x4] sm:$0xf]
        %v359 = vld [vmem:[%s2 + $0x8] sm:$0xf]
        %v360 = vld [vmem:[%s2 + $0xc] sm:$0xf]
        %v361 = vld [vmem:[%s2 + $0x10] sm:$0xf]
        %v362 = vld [vmem:[%s2 + $0x14] sm:$0xf]
        %v363 = vld [vmem:[%s2 + $0x18] sm:$0xf]
        %v364 = vld [vmem:[%s2 + $0x1c] sm:$0xf]
        %v365 = vld [vmem:[%s2 + $0x20] sm:$0xf]
        %v366 = vld [vmem:[%s2 + $0x24] sm:$0xf]
        %v367 = vld [vmem:[%s2 + $0x28] sm:$0xf]
        %v368 = vld [vmem:[%s2 + $0x2c] sm:$0xf]
        %v369 = vld [vmem:[%s2 + $0x30] sm:$0xf]
        %v370 = vld [vmem:[%s2 + $0x34] sm:$0xf]
        %v371 = vld [vmem:[%s2 + $0x38] sm:$0xf]
        %v372 = vld [vmem:[%s2 + $0x3c] sm:$0xf]
        %v373 = vld [vmem:[%s3] sm:$0x1]
        %v374 = vld [vmem:[%s3 + $0x1] sm:$0x1]
        %v375 = vld [vmem:[%s3 + $0x2] sm:$0x1]
        %v376 = vld [vmem:[%s3 + $0x3] sm:$0x1]
        %v381 = vlaneseq
        %v382 = vshrl.u32 %v381, 7
        %v383 = vsub.s32 0, %v382
        %v384 = vrot.slane %v373, %v383
        %v385 = vlaneseq
        %v386 = vshrl.u32 %v385, 7
        %v387 = vsub.s32 0, %v386
        %v388 = vrot.slane %v374, %v387
        %v389 = vlaneseq
        %v390 = vshrl.u32 %v389, 7
        %v391 = vsub.s32 0, %v390
        %v392 = vrot.slane %v375, %v391
        %v393 = vlaneseq
        %v394 = vshrl.u32 %v393, 7
        %v395 = vsub.s32 0, %v394
        %v396 = vrot.slane %v376, %v395
        %v405 = vunpack.c.l.b16 %v357
        %v406 = vunpack.c.l.b16 %v358
        %v407 = vunpack.c.l.b16 %v359
        %v408 = vunpack.c.l.b16 %v360
        %v409 = vpack.c.b16 %v406, %v405
        %v410 = vpack.c.b16 %v408, %v407
        %vm413 = vcmask 261120
        %v415 = vsel %vm413, %v356, 0
        %417 = vmatprep.subr.bf16.mxu0 0
        %418 = vmatpush1.bf16.msra.mxu0 0
        %419 = vmatprep.subr.bf16.mxu0 0
        %420 = vmatpush1.bf16.msra.mxu0 0
        %421 = vmatprep.subr.bf16.mxu0 0
        %422 = vmatpush1.bf16.msra.mxu0 0
        %423 = vmatprep.subr.bf16.mxu0 0
        %424 = vmatpush1.bf16.msra.mxu0 0
        %425 = vmatprep.subr.bf16.mxu0 0
        %426 = vmatpush1.bf16.msra.mxu0 0
        %427 = vmatprep.subr.bf16.mxu0 0
        %428 = vmatpush1.bf16.msra.mxu0 0
        %429 = vmatprep.subr.bf16.mxu0 0
        %430 = vmatpush1.bf16.msra.mxu0 %v410
        %431 = vmatprep.subr.bf16.mxu0 0
        %432 = vmatpush1.bf16.msra.mxu0 %v409
        %433 = vmatprep.subr.bf16.mxu0 0
        %434 = vmatpush2.bf16.msra.mxu0 0
        %435 = vmatprep.subr.bf16.mxu0 0
        %436 = vmatpush2.bf16.msra.mxu0 0
        %437 = vmatprep.subr.bf16.mxu0 0
        %438 = vmatpush2.bf16.msra.mxu0 0
        %439 = vmatprep.subr.bf16.mxu0 0
        %440 = vmatpush2.bf16.msra.mxu0 0
        %441 = vmatprep.subr.bf16.mxu0 0
        %442 = vmatpush2.bf16.msra.mxu0 0
        %443 = vmatprep.subr.bf16.mxu0 0
        %444 = vmatpush2.bf16.msra.mxu0 0
        %445 = vmatprep.subr.bf16.mxu0 0
        %446 = vmatpush2.bf16.msra.mxu0 0
        %447 = vmatprep.subr.bf16.mxu0 0
        %448 = vmatpush2.bf16.msra.mxu0 0
        %449 = vmatprep.mubr.bf16.mxu0 0
        %450 = vmatmul.mubr.bf16.gmra.mxu0 %v415
        %v451 = vpop.f32.mrf.mxu0
        %v452 = vadd.f32 %v384, %v451
        %v453 = vpop.f32.mrf.mxu0
        %v454 = vpop.f32.mrf.mxu0
        %v455 = vpop.f32.mrf.mxu0
        %456 = vdwg.mxu0
        %v461 = vunpack.c.l.b16 %v361
        %v462 = vunpack.c.l.b16 %v362
        %v463 = vunpack.c.l.b16 %v363
        %v464 = vunpack.c.l.b16 %v364
        %v465 = vpack.c.b16 %v462, %v461
        %v466 = vpack.c.b16 %v464, %v463
        %469 = vmatprep.subr.bf16.mxu0 0
        %470 = vmatpush1.bf16.msra.mxu0 0
        %471 = vmatprep.subr.bf16.mxu0 0
        %472 = vmatpush1.bf16.msra.mxu0 0
        %473 = vmatprep.subr.bf16.mxu0 0
        %474 = vmatpush1.bf16.msra.mxu0 0
        %475 = vmatprep.subr.bf16.mxu0 0
        %476 = vmatpush1.bf16.msra.mxu0 0
        %477 = vmatprep.subr.bf16.mxu0 0
        %478 = vmatpush1.bf16.msra.mxu0 0
        %479 = vmatprep.subr.bf16.mxu0 0
        %480 = vmatpush1.bf16.msra.mxu0 0
        %481 = vmatprep.subr.bf16.mxu0 0
        %482 = vmatpush1.bf16.msra.mxu0 %v466
        %483 = vmatprep.subr.bf16.mxu0 0
        %484 = vmatpush1.bf16.msra.mxu0 %v465
        %485 = vmatprep.subr.bf16.mxu0 0
        %486 = vmatpush2.bf16.msra.mxu0 0
        %487 = vmatprep.subr.bf16.mxu0 0
        %488 = vmatpush2.bf16.msra.mxu0 0
        %489 = vmatprep.subr.bf16.mxu0 0
        %490 = vmatpush2.bf16.msra.mxu0 0
        %491 = vmatprep.subr.bf16.mxu0 0
        %492 = vmatpush2.bf16.msra.mxu0 0
        %493 = vmatprep.subr.bf16.mxu0 0
        %494 = vmatpush2.bf16.msra.mxu0 0
        %495 = vmatprep.subr.bf16.mxu0 0
        %496 = vmatpush2.bf16.msra.mxu0 0
        %497 = vmatprep.subr.bf16.mxu0 0
        %498 = vmatpush2.bf16.msra.mxu0 0
        %499 = vmatprep.subr.bf16.mxu0 0
        %500 = vmatpush2.bf16.msra.mxu0 0
        %501 = vmatprep.mubr.bf16.mxu0 0
        %502 = vmatmul.mubr.bf16.gmra.mxu0 %v415
        %v503 = vpop.f32.mrf.mxu0
        %v504 = vadd.f32 %v388, %v503
        %v505 = vpop.f32.mrf.mxu0
        %v506 = vpop.f32.mrf.mxu0
        %v507 = vpop.f32.mrf.mxu0
        %508 = vdwg.mxu0
        %v513 = vunpack.c.l.b16 %v365
        %v514 = vunpack.c.l.b16 %v366
        %v515 = vunpack.c.l.b16 %v367
        %v516 = vunpack.c.l.b16 %v368
        %v517 = vpack.c.b16 %v514, %v513
        %v518 = vpack.c.b16 %v516, %v515
        %521 = vmatprep.subr.bf16.mxu0 0
        %522 = vmatpush1.bf16.msra.mxu0 0
        %523 = vmatprep.subr.bf16.mxu0 0
        %524 = vmatpush1.bf16.msra.mxu0 0
        %525 = vmatprep.subr.bf16.mxu0 0
        %526 = vmatpush1.bf16.msra.mxu0 0
        %527 = vmatprep.subr.bf16.mxu0 0
        %528 = vmatpush1.bf16.msra.mxu0 0
        %529 = vmatprep.subr.bf16.mxu0 0
        %530 = vmatpush1.bf16.msra.mxu0 0
        %531 = vmatprep.subr.bf16.mxu0 0
        %532 = vmatpush1.bf16.msra.mxu0 0
        %533 = vmatprep.subr.bf16.mxu0 0
        %534 = vmatpush1.bf16.msra.mxu0 %v518
        %535 = vmatprep.subr.bf16.mxu0 0
        %536 = vmatpush1.bf16.msra.mxu0 %v517
        %537 = vmatprep.subr.bf16.mxu0 0
        %538 = vmatpush2.bf16.msra.mxu0 0
        %539 = vmatprep.subr.bf16.mxu0 0
        %540 = vmatpush2.bf16.msra.mxu0 0
        %541 = vmatprep.subr.bf16.mxu0 0
        %542 = vmatpush2.bf16.msra.mxu0 0
        %543 = vmatprep.subr.bf16.mxu0 0
        %544 = vmatpush2.bf16.msra.mxu0 0
        %545 = vmatprep.subr.bf16.mxu0 0
        %546 = vmatpush2.bf16.msra.mxu0 0
        %547 = vmatprep.subr.bf16.mxu0 0
        %548 = vmatpush2.bf16.msra.mxu0 0
        %549 = vmatprep.subr.bf16.mxu0 0
        %550 = vmatpush2.bf16.msra.mxu0 0
        %551 = vmatprep.subr.bf16.mxu0 0
        %552 = vmatpush2.bf16.msra.mxu0 0
        %553 = vmatprep.mubr.bf16.mxu0 0
        %554 = vmatmul.mubr.bf16.gmra.mxu0 %v415
        %v555 = vpop.f32.mrf.mxu0
        %v556 = vadd.f32 %v392, %v555
        %v557 = vpop.f32.mrf.mxu0
        %v558 = vpop.f32.mrf.mxu0
        %v559 = vpop.f32.mrf.mxu0
        %560 = vdwg.mxu0
        %v565 = vunpack.c.l.b16 %v369
        %v566 = vunpack.c.l.b16 %v370
        %v567 = vunpack.c.l.b16 %v371
        %v568 = vunpack.c.l.b16 %v372
        %v569 = vpack.c.b16 %v566, %v565
        %v570 = vpack.c.b16 %v568, %v567
        %573 = vmatprep.subr.bf16.mxu0 0
        %574 = vmatpush1.bf16.msra.mxu0 0
        %575 = vmatprep.subr.bf16.mxu0 0
        %576 = vmatpush1.bf16.msra.mxu0 0
        %577 = vmatprep.subr.bf16.mxu0 0
        %578 = vmatpush1.bf16.msra.mxu0 0
        %579 = vmatprep.subr.bf16.mxu0 0
        %580 = vmatpush1.bf16.msra.mxu0 0
        %581 = vmatprep.subr.bf16.mxu0 0
        %582 = vmatpush1.bf16.msra.mxu0 0
        %583 = vmatprep.subr.bf16.mxu0 0
        %584 = vmatpush1.bf16.msra.mxu0 0
        %585 = vmatprep.subr.bf16.mxu0 0
        %586 = vmatpush1.bf16.msra.mxu0 %v570
        %587 = vmatprep.subr.bf16.mxu0 0
        %588 = vmatpush1.bf16.msra.mxu0 %v569
        %589 = vmatprep.subr.bf16.mxu0 0
        %590 = vmatpush2.bf16.msra.mxu0 0
        %591 = vmatprep.subr.bf16.mxu0 0
        %592 = vmatpush2.bf16.msra.mxu0 0
        %593 = vmatprep.subr.bf16.mxu0 0
        %594 = vmatpush2.bf16.msra.mxu0 0
        %595 = vmatprep.subr.bf16.mxu0 0
        %596 = vmatpush2.bf16.msra.mxu0 0
        %597 = vmatprep.subr.bf16.mxu0 0
        %598 = vmatpush2.bf16.msra.mxu0 0
        %599 = vmatprep.subr.bf16.mxu0 0
        %600 = vmatpush2.bf16.msra.mxu0 0
        %601 = vmatprep.subr.bf16.mxu0 0
        %602 = vmatpush2.bf16.msra.mxu0 0
        %603 = vmatprep.subr.bf16.mxu0 0
        %604 = vmatpush2.bf16.msra.mxu0 0
        %605 = vmatprep.mubr.bf16.mxu0 0
        %606 = vmatmul.mubr.bf16.gmra.mxu0 %v415
        %v607 = vpop.f32.mrf.mxu0
        %v608 = vadd.f32 %v396, %v607
        %v609 = vpop.f32.mrf.mxu0
        %v610 = vpop.f32.mrf.mxu0
        %v611 = vpop.f32.mrf.mxu0
        %612 = vdwg.mxu0
        %v613 = vld [vmem:[%s4] sm:$0xf]
        %v614 = vld [vmem:[%s4 + $0x4] sm:$0xf]
        %v615 = vld [vmem:[%s4 + $0x8] sm:$0xf]
        %v616 = vld [vmem:[%s4 + $0xc] sm:$0xf]
        %v617 = vld [vmem:[%s4 + $0x10] sm:$0xf]
        %v618 = vld [vmem:[%s4 + $0x14] sm:$0xf]
        %v619 = vld [vmem:[%s4 + $0x18] sm:$0xf]
        %v620 = vld [vmem:[%s4 + $0x1c] sm:$0xf]
        %v621 = vld [vmem:[%s4 + $0x20] sm:$0xf]
        %v622 = vld [vmem:[%s4 + $0x24] sm:$0xf]
        %v623 = vld [vmem:[%s4 + $0x28] sm:$0xf]
        %v624 = vld [vmem:[%s4 + $0x2c] sm:$0xf]
        %v625 = vld [vmem:[%s4 + $0x30] sm:$0xf]
        %v626 = vld [vmem:[%s4 + $0x34] sm:$0xf]
        %v627 = vld [vmem:[%s4 + $0x38] sm:$0xf]
        %v628 = vld [vmem:[%s4 + $0x3c] sm:$0xf]
        %v629 = vld [vmem:[%s5] sm:$0x1]
        %v630 = vld [vmem:[%s5 + $0x1] sm:$0x1]
        %v631 = vld [vmem:[%s5 + $0x2] sm:$0x1]
        %v632 = vld [vmem:[%s5 + $0x3] sm:$0x1]
        %v637 = vlaneseq
        %v638 = vshrl.u32 %v637, 7
        %v639 = vsub.s32 0, %v638
        %v640 = vrot.slane %v629, %v639
        %v641 = vlaneseq
        %v642 = vshrl.u32 %v641, 7
        %v643 = vsub.s32 0, %v642
        %v644 = vrot.slane %v630, %v643
        %v645 = vlaneseq
        %v646 = vshrl.u32 %v645, 7
        %v647 = vsub.s32 0, %v646
        %v648 = vrot.slane %v631, %v647
        %v649 = vlaneseq
        %v650 = vshrl.u32 %v649, 7
        %v651 = vsub.s32 0, %v650
        %v652 = vrot.slane %v632, %v651
        %v661 = vunpack.c.l.b16 %v613
        %v662 = vunpack.c.l.b16 %v614
        %v663 = vunpack.c.l.b16 %v615
        %v664 = vunpack.c.l.b16 %v616
        %v665 = vpack.c.b16 %v662, %v661
        %v666 = vpack.c.b16 %v664, %v663
        %669 = vmatprep.subr.bf16.mxu0 0
        %670 = vmatpush1.bf16.msra.mxu0 0
        %671 = vmatprep.subr.bf16.mxu0 0
        %672 = vmatpush1.bf16.msra.mxu0 0
        %673 = vmatprep.subr.bf16.mxu0 0
        %674 = vmatpush1.bf16.msra.mxu0 0
        %675 = vmatprep.subr.bf16.mxu0 0
        %676 = vmatpush1.bf16.msra.mxu0 0
        %677 = vmatprep.subr.bf16.mxu0 0
        %678 = vmatpush1.bf16.msra.mxu0 0
        %679 = vmatprep.subr.bf16.mxu0 0
        %680 = vmatpush1.bf16.msra.mxu0 0
        %681 = vmatprep.subr.bf16.mxu0 0
        %682 = vmatpush1.bf16.msra.mxu0 %v666
        %683 = vmatprep.subr.bf16.mxu0 0
        %684 = vmatpush1.bf16.msra.mxu0 %v665
        %685 = vmatprep.subr.bf16.mxu0 0
        %686 = vmatpush2.bf16.msra.mxu0 0
        %687 = vmatprep.subr.bf16.mxu0 0
        %688 = vmatpush2.bf16.msra.mxu0 0
        %689 = vmatprep.subr.bf16.mxu0 0
        %690 = vmatpush2.bf16.msra.mxu0 0
        %691 = vmatprep.subr.bf16.mxu0 0
        %692 = vmatpush2.bf16.msra.mxu0 0
        %693 = vmatprep.subr.bf16.mxu0 0
        %694 = vmatpush2.bf16.msra.mxu0 0
        %695 = vmatprep.subr.bf16.mxu0 0
        %696 = vmatpush2.bf16.msra.mxu0 0
        %697 = vmatprep.subr.bf16.mxu0 0
        %698 = vmatpush2.bf16.msra.mxu0 0
        %699 = vmatprep.subr.bf16.mxu0 0
        %700 = vmatpush2.bf16.msra.mxu0 0
        %701 = vmatprep.mubr.bf16.mxu0 0
        %702 = vmatmul.mubr.bf16.gmra.mxu0 %v415
        %v703 = vpop.f32.mrf.mxu0
        %v704 = vadd.f32 %v640, %v703
        %v705 = vpop.f32.mrf.mxu0
        %v706 = vpop.f32.mrf.mxu0
        %v707 = vpop.f32.mrf.mxu0
        %708 = vdwg.mxu0
        %v713 = vunpack.c.l.b16 %v617
        %v714 = vunpack.c.l.b16 %v618
        %v715 = vunpack.c.l.b16 %v619
        %v716 = vunpack.c.l.b16 %v620
        %v717 = vpack.c.b16 %v714, %v713
        %v718 = vpack.c.b16 %v716, %v715
        %721 = vmatprep.subr.bf16.mxu0 0
        %722 = vmatpush1.bf16.msra.mxu0 0
        %723 = vmatprep.subr.bf16.mxu0 0
        %724 = vmatpush1.bf16.msra.mxu0 0
        %725 = vmatprep.subr.bf16.mxu0 0
        %726 = vmatpush1.bf16.msra.mxu0 0
        %727 = vmatprep.subr.bf16.mxu0 0
        %728 = vmatpush1.bf16.msra.mxu0 0
        %729 = vmatprep.subr.bf16.mxu0 0
        %730 = vmatpush1.bf16.msra.mxu0 0
        %731 = vmatprep.subr.bf16.mxu0 0
        %732 = vmatpush1.bf16.msra.mxu0 0
        %733 = vmatprep.subr.bf16.mxu0 0
        %734 = vmatpush1.bf16.msra.mxu0 %v718
        %735 = vmatprep.subr.bf16.mxu0 0
        %736 = vmatpush1.bf16.msra.mxu0 %v717
        %737 = vmatprep.subr.bf16.mxu0 0
        %738 = vmatpush2.bf16.msra.mxu0 0
        %739 = vmatprep.subr.bf16.mxu0 0
        %740 = vmatpush2.bf16.msra.mxu0 0
        %741 = vmatprep.subr.bf16.mxu0 0
        %742 = vmatpush2.bf16.msra.mxu0 0
        %743 = vmatprep.subr.bf16.mxu0 0
        %744 = vmatpush2.bf16.msra.mxu0 0
        %745 = vmatprep.subr.bf16.mxu0 0
        %746 = vmatpush2.bf16.msra.mxu0 0
        %747 = vmatprep.subr.bf16.mxu0 0
        %748 = vmatpush2.bf16.msra.mxu0 0
        %749 = vmatprep.subr.bf16.mxu0 0
        %750 = vmatpush2.bf16.msra.mxu0 0
        %751 = vmatprep.subr.bf16.mxu0 0
        %752 = vmatpush2.bf16.msra.mxu0 0
        %753 = vmatprep.mubr.bf16.mxu0 0
        %754 = vmatmul.mubr.bf16.gmra.mxu0 %v415
        %v755 = vpop.f32.mrf.mxu0
        %v756 = vadd.f32 %v644, %v755
        %v757 = vpop.f32.mrf.mxu0
        %v758 = vpop.f32.mrf.mxu0
        %v759 = vpop.f32.mrf.mxu0
        %760 = vdwg.mxu0
        %v765 = vunpack.c.l.b16 %v621
        %v766 = vunpack.c.l.b16 %v622
        %v767 = vunpack.c.l.b16 %v623
        %v768 = vunpack.c.l.b16 %v624
        %v769 = vpack.c.b16 %v766, %v765
        %v770 = vpack.c.b16 %v768, %v767
        %773 = vmatprep.subr.bf16.mxu0 0
        %774 = vmatpush1.bf16.msra.mxu0 0
        %775 = vmatprep.subr.bf16.mxu0 0
        %776 = vmatpush1.bf16.msra.mxu0 0
        %777 = vmatprep.subr.bf16.mxu0 0
        %778 = vmatpush1.bf16.msra.mxu0 0
        %779 = vmatprep.subr.bf16.mxu0 0
        %780 = vmatpush1.bf16.msra.mxu0 0
        %781 = vmatprep.subr.bf16.mxu0 0
        %782 = vmatpush1.bf16.msra.mxu0 0
        %783 = vmatprep.subr.bf16.mxu0 0
        %784 = vmatpush1.bf16.msra.mxu0 0
        %785 = vmatprep.subr.bf16.mxu0 0
        %786 = vmatpush1.bf16.msra.mxu0 %v770
        %787 = vmatprep.subr.bf16.mxu0 0
        %788 = vmatpush1.bf16.msra.mxu0 %v769
        %789 = vmatprep.subr.bf16.mxu0 0
        %790 = vmatpush2.bf16.msra.mxu0 0
        %791 = vmatprep.subr.bf16.mxu0 0
        %792 = vmatpush2.bf16.msra.mxu0 0
        %793 = vmatprep.subr.bf16.mxu0 0
        %794 = vmatpush2.bf16.msra.mxu0 0
        %795 = vmatprep.subr.bf16.mxu0 0
        %796 = vmatpush2.bf16.msra.mxu0 0
        %797 = vmatprep.subr.bf16.mxu0 0
        %798 = vmatpush2.bf16.msra.mxu0 0
        %799 = vmatprep.subr.bf16.mxu0 0
        %800 = vmatpush2.bf16.msra.mxu0 0
        %801 = vmatprep.subr.bf16.mxu0 0
        %802 = vmatpush2.bf16.msra.mxu0 0
        %803 = vmatprep.subr.bf16.mxu0 0
        %804 = vmatpush2.bf16.msra.mxu0 0
        %805 = vmatprep.mubr.bf16.mxu0 0
        %806 = vmatmul.mubr.bf16.gmra.mxu0 %v415
        %v807 = vpop.f32.mrf.mxu0
        %v808 = vadd.f32 %v648, %v807
        %v809 = vpop.f32.mrf.mxu0
        %v810 = vpop.f32.mrf.mxu0
        %v811 = vpop.f32.mrf.mxu0
        %812 = vdwg.mxu0
        %v817 = vunpack.c.l.b16 %v625
        %v818 = vunpack.c.l.b16 %v626
        %v819 = vunpack.c.l.b16 %v627
        %v820 = vunpack.c.l.b16 %v628
        %v821 = vpack.c.b16 %v818, %v817
        %v822 = vpack.c.b16 %v820, %v819
        %825 = vmatprep.subr.bf16.mxu0 0
        %826 = vmatpush1.bf16.msra.mxu0 0
        %827 = vmatprep.subr.bf16.mxu0 0
        %828 = vmatpush1.bf16.msra.mxu0 0
        %829 = vmatprep.subr.bf16.mxu0 0
        %830 = vmatpush1.bf16.msra.mxu0 0
        %831 = vmatprep.subr.bf16.mxu0 0
        %832 = vmatpush1.bf16.msra.mxu0 0
        %833 = vmatprep.subr.bf16.mxu0 0
        %834 = vmatpush1.bf16.msra.mxu0 0
        %835 = vmatprep.subr.bf16.mxu0 0
        %836 = vmatpush1.bf16.msra.mxu0 0
        %837 = vmatprep.subr.bf16.mxu0 0
        %838 = vmatpush1.bf16.msra.mxu0 %v822
        %839 = vmatprep.subr.bf16.mxu0 0
        %840 = vmatpush1.bf16.msra.mxu0 %v821
        %841 = vmatprep.subr.bf16.mxu0 0
        %842 = vmatpush2.bf16.msra.mxu0 0
        %843 = vmatprep.subr.bf16.mxu0 0
        %844 = vmatpush2.bf16.msra.mxu0 0
        %845 = vmatprep.subr.bf16.mxu0 0
        %846 = vmatpush2.bf16.msra.mxu0 0
        %847 = vmatprep.subr.bf16.mxu0 0
        %848 = vmatpush2.bf16.msra.mxu0 0
        %849 = vmatprep.subr.bf16.mxu0 0
        %850 = vmatpush2.bf16.msra.mxu0 0
        %851 = vmatprep.subr.bf16.mxu0 0
        %852 = vmatpush2.bf16.msra.mxu0 0
        %853 = vmatprep.subr.bf16.mxu0 0
        %854 = vmatpush2.bf16.msra.mxu0 0
        %855 = vmatprep.subr.bf16.mxu0 0
        %856 = vmatpush2.bf16.msra.mxu0 0
        %857 = vmatprep.mubr.bf16.mxu0 0
        %858 = vmatmul.mubr.bf16.gmra.mxu0 %v415
        %v859 = vpop.f32.mrf.mxu0
        %v860 = vadd.f32 %v652, %v859
        %v861 = vpop.f32.mrf.mxu0
        %v862 = vpop.f32.mrf.mxu0
        %v863 = vpop.f32.mrf.mxu0
        %864 = vdwg.mxu0
        %v865 = vld [vmem:[%s6] sm:$0xf]
        %v866 = vld [vmem:[%s6 + $0x4] sm:$0xf]
        %v867 = vld [vmem:[%s6 + $0x8] sm:$0xf]
        %v868 = vld [vmem:[%s6 + $0xc] sm:$0xf]
        %v869 = vld [vmem:[%s6 + $0x10] sm:$0xf]
        %v870 = vld [vmem:[%s6 + $0x14] sm:$0xf]
        %v871 = vld [vmem:[%s6 + $0x18] sm:$0xf]
        %v872 = vld [vmem:[%s6 + $0x1c] sm:$0xf]
        %v873 = vld [vmem:[%s6 + $0x20] sm:$0xf]
        %v874 = vld [vmem:[%s6 + $0x24] sm:$0xf]
        %v875 = vld [vmem:[%s6 + $0x28] sm:$0xf]
        %v876 = vld [vmem:[%s6 + $0x2c] sm:$0xf]
        %v877 = vld [vmem:[%s6 + $0x30] sm:$0xf]
        %v878 = vld [vmem:[%s6 + $0x34] sm:$0xf]
        %v879 = vld [vmem:[%s6 + $0x38] sm:$0xf]
        %v880 = vld [vmem:[%s6 + $0x3c] sm:$0xf]
        %v881 = vld [vmem:[%s7] sm:$0x1]
        %v882 = vld [vmem:[%s7 + $0x1] sm:$0x1]
        %v883 = vld [vmem:[%s7 + $0x2] sm:$0x1]
        %v884 = vld [vmem:[%s7 + $0x3] sm:$0x1]
        %v889 = vlaneseq
        %v890 = vshrl.u32 %v889, 7
        %v891 = vsub.s32 0, %v890
        %v892 = vrot.slane %v881, %v891
        %v893 = vlaneseq
        %v894 = vshrl.u32 %v893, 7
        %v895 = vsub.s32 0, %v894
        %v896 = vrot.slane %v882, %v895
        %v897 = vlaneseq
        %v898 = vshrl.u32 %v897, 7
        %v899 = vsub.s32 0, %v898
        %v900 = vrot.slane %v883, %v899
        %v901 = vlaneseq
        %v902 = vshrl.u32 %v901, 7
        %v903 = vsub.s32 0, %v902
        %v904 = vrot.slane %v884, %v903
        %v913 = vunpack.c.l.b16 %v865
        %v914 = vunpack.c.l.b16 %v866
        %v915 = vunpack.c.l.b16 %v867
        %v916 = vunpack.c.l.b16 %v868
        %v917 = vpack.c.b16 %v914, %v913
        %v918 = vpack.c.b16 %v916, %v915
        %921 = vmatprep.subr.bf16.mxu0 0
        %922 = vmatpush1.bf16.msra.mxu0 0
        %923 = vmatprep.subr.bf16.mxu0 0
        %924 = vmatpush1.bf16.msra.mxu0 0
        %925 = vmatprep.subr.bf16.mxu0 0
        %926 = vmatpush1.bf16.msra.mxu0 0
        %927 = vmatprep.subr.bf16.mxu0 0
        %928 = vmatpush1.bf16.msra.mxu0 0
        %929 = vmatprep.subr.bf16.mxu0 0
        %930 = vmatpush1.bf16.msra.mxu0 0
        %931 = vmatprep.subr.bf16.mxu0 0
        %932 = vmatpush1.bf16.msra.mxu0 0
        %933 = vmatprep.subr.bf16.mxu0 0
        %934 = vmatpush1.bf16.msra.mxu0 %v918
        %935 = vmatprep.subr.bf16.mxu0 0
        %936 = vmatpush1.bf16.msra.mxu0 %v917
        %937 = vmatprep.subr.bf16.mxu0 0
        %938 = vmatpush2.bf16.msra.mxu0 0
        %939 = vmatprep.subr.bf16.mxu0 0
        %940 = vmatpush2.bf16.msra.mxu0 0
        %941 = vmatprep.subr.bf16.mxu0 0
        %942 = vmatpush2.bf16.msra.mxu0 0
        %943 = vmatprep.subr.bf16.mxu0 0
        %944 = vmatpush2.bf16.msra.mxu0 0
        %945 = vmatprep.subr.bf16.mxu0 0
        %946 = vmatpush2.bf16.msra.mxu0 0
        %947 = vmatprep.subr.bf16.mxu0 0
        %948 = vmatpush2.bf16.msra.mxu0 0
        %949 = vmatprep.subr.bf16.mxu0 0
        %950 = vmatpush2.bf16.msra.mxu0 0
        %951 = vmatprep.subr.bf16.mxu0 0
        %952 = vmatpush2.bf16.msra.mxu0 0
        %953 = vmatprep.mubr.bf16.mxu0 0
        %954 = vmatmul.mubr.bf16.gmra.mxu0 %v415
        %v955 = vpop.f32.mrf.mxu0
        %v956 = vadd.f32 %v892, %v955
        %v957 = vpop.f32.mrf.mxu0
        %v958 = vpop.f32.mrf.mxu0
        %v959 = vpop.f32.mrf.mxu0
        %960 = vdwg.mxu0
        %v965 = vunpack.c.l.b16 %v869
        %v966 = vunpack.c.l.b16 %v870
        %v967 = vunpack.c.l.b16 %v871
        %v968 = vunpack.c.l.b16 %v872
        %v969 = vpack.c.b16 %v966, %v965
        %v970 = vpack.c.b16 %v968, %v967
        %973 = vmatprep.subr.bf16.mxu0 0
        %974 = vmatpush1.bf16.msra.mxu0 0
        %975 = vmatprep.subr.bf16.mxu0 0
        %976 = vmatpush1.bf16.msra.mxu0 0
        %977 = vmatprep.subr.bf16.mxu0 0
        %978 = vmatpush1.bf16.msra.mxu0 0
        %979 = vmatprep.subr.bf16.mxu0 0
        %980 = vmatpush1.bf16.msra.mxu0 0
        %981 = vmatprep.subr.bf16.mxu0 0
        %982 = vmatpush1.bf16.msra.mxu0 0
        %983 = vmatprep.subr.bf16.mxu0 0
        %984 = vmatpush1.bf16.msra.mxu0 0
        %985 = vmatprep.subr.bf16.mxu0 0
        %986 = vmatpush1.bf16.msra.mxu0 %v970
        %987 = vmatprep.subr.bf16.mxu0 0
        %988 = vmatpush1.bf16.msra.mxu0 %v969
        %989 = vmatprep.subr.bf16.mxu0 0
        %990 = vmatpush2.bf16.msra.mxu0 0
        %991 = vmatprep.subr.bf16.mxu0 0
        %992 = vmatpush2.bf16.msra.mxu0 0
        %993 = vmatprep.subr.bf16.mxu0 0
        %994 = vmatpush2.bf16.msra.mxu0 0
        %995 = vmatprep.subr.bf16.mxu0 0
        %996 = vmatpush2.bf16.msra.mxu0 0
        %997 = vmatprep.subr.bf16.mxu0 0
        %998 = vmatpush2.bf16.msra.mxu0 0
        %999 = vmatprep.subr.bf16.mxu0 0
        %1000 = vmatpush2.bf16.msra.mxu0 0
        %1001 = vmatprep.subr.bf16.mxu0 0
        %1002 = vmatpush2.bf16.msra.mxu0 0
        %1003 = vmatprep.subr.bf16.mxu0 0
        %1004 = vmatpush2.bf16.msra.mxu0 0
        %1005 = vmatprep.mubr.bf16.mxu0 0
        %1006 = vmatmul.mubr.bf16.gmra.mxu0 %v415
        %v1007 = vpop.f32.mrf.mxu0
        %v1008 = vadd.f32 %v896, %v1007
        %v1009 = vpop.f32.mrf.mxu0
        %v1010 = vpop.f32.mrf.mxu0
        %v1011 = vpop.f32.mrf.mxu0
        %1012 = vdwg.mxu0
        %v1017 = vunpack.c.l.b16 %v873
        %v1018 = vunpack.c.l.b16 %v874
        %v1019 = vunpack.c.l.b16 %v875
        %v1020 = vunpack.c.l.b16 %v876
        %v1021 = vpack.c.b16 %v1018, %v1017
        %v1022 = vpack.c.b16 %v1020, %v1019
        %1025 = vmatprep.subr.bf16.mxu0 0
        %1026 = vmatpush1.bf16.msra.mxu0 0
        %1027 = vmatprep.subr.bf16.mxu0 0
        %1028 = vmatpush1.bf16.msra.mxu0 0
        %1029 = vmatprep.subr.bf16.mxu0 0
        %1030 = vmatpush1.bf16.msra.mxu0 0
        %1031 = vmatprep.subr.bf16.mxu0 0
        %1032 = vmatpush1.bf16.msra.mxu0 0
        %1033 = vmatprep.subr.bf16.mxu0 0
        %1034 = vmatpush1.bf16.msra.mxu0 0
        %1035 = vmatprep.subr.bf16.mxu0 0
        %1036 = vmatpush1.bf16.msra.mxu0 0
        %1037 = vmatprep.subr.bf16.mxu0 0
        %1038 = vmatpush1.bf16.msra.mxu0 %v1022
        %1039 = vmatprep.subr.bf16.mxu0 0
        %1040 = vmatpush1.bf16.msra.mxu0 %v1021
        %1041 = vmatprep.subr.bf16.mxu0 0
        %1042 = vmatpush2.bf16.msra.mxu0 0
        %1043 = vmatprep.subr.bf16.mxu0 0
        %1044 = vmatpush2.bf16.msra.mxu0 0
        %1045 = vmatprep.subr.bf16.mxu0 0
        %1046 = vmatpush2.bf16.msra.mxu0 0
        %1047 = vmatprep.subr.bf16.mxu0 0
        %1048 = vmatpush2.bf16.msra.mxu0 0
        %1049 = vmatprep.subr.bf16.mxu0 0
        %1050 = vmatpush2.bf16.msra.mxu0 0
        %1051 = vmatprep.subr.bf16.mxu0 0
        %1052 = vmatpush2.bf16.msra.mxu0 0
        %1053 = vmatprep.subr.bf16.mxu0 0
        %1054 = vmatpush2.bf16.msra.mxu0 0
        %1055 = vmatprep.subr.bf16.mxu0 0
        %1056 = vmatpush2.bf16.msra.mxu0 0
        %1057 = vmatprep.mubr.bf16.mxu0 0
        %1058 = vmatmul.mubr.bf16.gmra.mxu0 %v415
        %v1059 = vpop.f32.mrf.mxu0
        %v1060 = vadd.f32 %v900, %v1059
        %v1061 = vpop.f32.mrf.mxu0
        %v1062 = vpop.f32.mrf.mxu0
        %v1063 = vpop.f32.mrf.mxu0
        %1064 = vdwg.mxu0
        %v1069 = vunpack.c.l.b16 %v877
        %v1070 = vunpack.c.l.b16 %v878
        %v1071 = vunpack.c.l.b16 %v879
        %v1072 = vunpack.c.l.b16 %v880
        %v1073 = vpack.c.b16 %v1070, %v1069
        %v1074 = vpack.c.b16 %v1072, %v1071
        %1077 = vmatprep.subr.bf16.mxu0 0
        %1078 = vmatpush1.bf16.msra.mxu0 0
        %1079 = vmatprep.subr.bf16.mxu0 0
        %1080 = vmatpush1.bf16.msra.mxu0 0
        %1081 = vmatprep.subr.bf16.mxu0 0
        %1082 = vmatpush1.bf16.msra.mxu0 0
        %1083 = vmatprep.subr.bf16.mxu0 0
        %1084 = vmatpush1.bf16.msra.mxu0 0
        %1085 = vmatprep.subr.bf16.mxu0 0
        %1086 = vmatpush1.bf16.msra.mxu0 0
        %1087 = vmatprep.subr.bf16.mxu0 0
        %1088 = vmatpush1.bf16.msra.mxu0 0
        %1089 = vmatprep.subr.bf16.mxu0 0
        %1090 = vmatpush1.bf16.msra.mxu0 %v1074
        %1091 = vmatprep.subr.bf16.mxu0 0
        %1092 = vmatpush1.bf16.msra.mxu0 %v1073
        %1093 = vmatprep.subr.bf16.mxu0 0
        %1094 = vmatpush2.bf16.msra.mxu0 0
        %1095 = vmatprep.subr.bf16.mxu0 0
        %1096 = vmatpush2.bf16.msra.mxu0 0
        %1097 = vmatprep.subr.bf16.mxu0 0
        %1098 = vmatpush2.bf16.msra.mxu0 0
        %1099 = vmatprep.subr.bf16.mxu0 0
        %1100 = vmatpush2.bf16.msra.mxu0 0
        %1101 = vmatprep.subr.bf16.mxu0 0
        %1102 = vmatpush2.bf16.msra.mxu0 0
        %1103 = vmatprep.subr.bf16.mxu0 0
        %1104 = vmatpush2.bf16.msra.mxu0 0
        %1105 = vmatprep.subr.bf16.mxu0 0
        %1106 = vmatpush2.bf16.msra.mxu0 0
        %1107 = vmatprep.subr.bf16.mxu0 0
        %1108 = vmatpush2.bf16.msra.mxu0 0
        %1109 = vmatprep.mubr.bf16.mxu0 0
        %1110 = vmatmul.mubr.bf16.gmra.mxu0 %v415
        %v1111 = vpop.f32.mrf.mxu0
        %v1112 = vadd.f32 %v904, %v1111
        %v1113 = vpop.f32.mrf.mxu0
        %v1114 = vpop.f32.mrf.mxu0
        %v1115 = vpop.f32.mrf.mxu0
        %1116 = vdwg.mxu0
        %v1117 = vpack.c.bf16 %v452, %v452
        %v1118 = vpack.c.bf16 %v504, %v504
        %v1119 = vpack.c.bf16 %v556, %v556
        %v1120 = vpack.c.bf16 %v608, %v608
        %v1121 = vpack.c.bf16 %v704, %v704
        %v1122 = vpack.c.bf16 %v756, %v756
        %v1123 = vpack.c.bf16 %v808, %v808
        %v1124 = vpack.c.bf16 %v860, %v860
        %v1125 = vld [vmem:[%s1] sm:$0xff]
        %vm1126 = vcmask 64512
        %v1128 = vsel %vm1126, %v1117, 0
        %v1131 = vsel %vm1126, %v1121, 0
        %1133 = vmatprep.subr.bf16.mxu0 0
        %1134 = vmatpush1.bf16.xpose.msra.mxu0 0
        %1135 = vmatprep.subr.bf16.mxu0 0
        %1136 = vmatpush1.bf16.xpose.msra.mxu0 0
        %1137 = vmatprep.subr.bf16.mxu0 0
        %1138 = vmatpush1.bf16.xpose.msra.mxu0 0
        %1139 = vmatprep.subr.bf16.mxu0 0
        %1140 = vmatpush1.bf16.xpose.msra.mxu0 0
        %1141 = vmatprep.subr.bf16.mxu0 0
        %1142 = vmatpush1.bf16.xpose.msra.mxu0 0
        %1143 = vmatprep.subr.bf16.mxu0 0
        %1144 = vmatpush1.bf16.xpose.msra.mxu0 0
        %1145 = vmatprep.subr.bf16.mxu0 0
        %1146 = vmatpush1.bf16.xpose.msra.mxu0 0
        %1147 = vmatprep.subr.bf16.mxu0 0
        %1148 = vmatpush1.bf16.xpose.msra.mxu0 %v1131
        %1149 = vmatprep.subr.bf16.mxu0 0
        %1150 = vmatpush2.bf16.xpose.msra.mxu0 0
        %1151 = vmatprep.subr.bf16.mxu0 0
        %1152 = vmatpush2.bf16.xpose.msra.mxu0 0
        %1153 = vmatprep.subr.bf16.mxu0 0
        %1154 = vmatpush2.bf16.xpose.msra.mxu0 0
        %1155 = vmatprep.subr.bf16.mxu0 0
        %1156 = vmatpush2.bf16.xpose.msra.mxu0 0
        %1157 = vmatprep.subr.bf16.mxu0 0
        %1158 = vmatpush2.bf16.xpose.msra.mxu0 0
        %1159 = vmatprep.subr.bf16.mxu0 0
        %1160 = vmatpush2.bf16.xpose.msra.mxu0 0
        %1161 = vmatprep.subr.bf16.mxu0 0
        %1162 = vmatpush2.bf16.xpose.msra.mxu0 0
        %1163 = vmatprep.subr.bf16.mxu0 0
        %1164 = vmatpush2.bf16.xpose.msra.mxu0 0
        %1165 = vmatprep.mubr.bf16.mxu0 0
        %1166 = vmatmul.mubr.bf16.gmra.mxu0 %v1128
        %v1167 = vpop.f32.mrf.mxu0
        %v1168 = vadd.f32 %v1125, %v1167
        %v1169 = vpop.f32.mrf.mxu0
        %v1170 = vpop.f32.mrf.mxu0
        %v1171 = vpop.f32.mrf.mxu0
        %1172 = vdwg.mxu0
        %v1174 = vsel %vm1126, %v1118, 0
        %v1177 = vsel %vm1126, %v1122, 0
        %1179 = vmatprep.subr.bf16.mxu0 0
        %1180 = vmatpush1.bf16.xpose.msra.mxu0 0
        %1181 = vmatprep.subr.bf16.mxu0 0
        %1182 = vmatpush1.bf16.xpose.msra.mxu0 0
        %1183 = vmatprep.subr.bf16.mxu0 0
        %1184 = vmatpush1.bf16.xpose.msra.mxu0 0
        %1185 = vmatprep.subr.bf16.mxu0 0
        %1186 = vmatpush1.bf16.xpose.msra.mxu0 0
        %1187 = vmatprep.subr.bf16.mxu0 0
        %1188 = vmatpush1.bf16.xpose.msra.mxu0 0
        %1189 = vmatprep.subr.bf16.mxu0 0
        %1190 = vmatpush1.bf16.xpose.msra.mxu0 0
        %1191 = vmatprep.subr.bf16.mxu0 0
        %1192 = vmatpush1.bf16.xpose.msra.mxu0 0
        %1193 = vmatprep.subr.bf16.mxu0 0
        %1194 = vmatpush1.bf16.xpose.msra.mxu0 %v1177
        %1195 = vmatprep.subr.bf16.mxu0 0
        %1196 = vmatpush2.bf16.xpose.msra.mxu0 0
        %1197 = vmatprep.subr.bf16.mxu0 0
        %1198 = vmatpush2.bf16.xpose.msra.mxu0 0
        %1199 = vmatprep.subr.bf16.mxu0 0
        %1200 = vmatpush2.bf16.xpose.msra.mxu0 0
        %1201 = vmatprep.subr.bf16.mxu0 0
        %1202 = vmatpush2.bf16.xpose.msra.mxu0 0
        %1203 = vmatprep.subr.bf16.mxu0 0
        %1204 = vmatpush2.bf16.xpose.msra.mxu0 0
        %1205 = vmatprep.subr.bf16.mxu0 0
        %1206 = vmatpush2.bf16.xpose.msra.mxu0 0
        %1207 = vmatprep.subr.bf16.mxu0 0
        %1208 = vmatpush2.bf16.xpose.msra.mxu0 0
        %1209 = vmatprep.subr.bf16.mxu0 0
        %1210 = vmatpush2.bf16.xpose.msra.mxu0 0
        %1211 = vmatprep.mubr.bf16.mxu0 0
        %1212 = vmatmul.mubr.bf16.gmra.mxu0 %v1174
        %v1213 = vpop.f32.mrf.mxu0
        %v1214 = vadd.f32 %v1125, %v1213
        %v1215 = vpop.f32.mrf.mxu0
        %v1216 = vpop.f32.mrf.mxu0
        %v1217 = vpop.f32.mrf.mxu0
        %1218 = vdwg.mxu0
        %v1220 = vsel %vm1126, %v1119, 0
        %v1223 = vsel %vm1126, %v1123, 0
        %1225 = vmatprep.subr.bf16.mxu0 0
        %1226 = vmatpush1.bf16.xpose.msra.mxu0 0
        %1227 = vmatprep.subr.bf16.mxu0 0
        %1228 = vmatpush1.bf16.xpose.msra.mxu0 0
        %1229 = vmatprep.subr.bf16.mxu0 0
        %1230 = vmatpush1.bf16.xpose.msra.mxu0 0
        %1231 = vmatprep.subr.bf16.mxu0 0
        %1232 = vmatpush1.bf16.xpose.msra.mxu0 0
        %1233 = vmatprep.subr.bf16.mxu0 0
        %1234 = vmatpush1.bf16.xpose.msra.mxu0 0
        %1235 = vmatprep.subr.bf16.mxu0 0
        %1236 = vmatpush1.bf16.xpose.msra.mxu0 0
        %1237 = vmatprep.subr.bf16.mxu0 0
        %1238 = vmatpush1.bf16.xpose.msra.mxu0 0
        %1239 = vmatprep.subr.bf16.mxu0 0
        %1240 = vmatpush1.bf16.xpose.msra.mxu0 %v1223
        %1241 = vmatprep.subr.bf16.mxu0 0
        %1242 = vmatpush2.bf16.xpose.msra.mxu0 0
        %1243 = vmatprep.subr.bf16.mxu0 0
        %1244 = vmatpush2.bf16.xpose.msra.mxu0 0
        %1245 = vmatprep.subr.bf16.mxu0 0
        %1246 = vmatpush2.bf16.xpose.msra.mxu0 0
        %1247 = vmatprep.subr.bf16.mxu0 0
        %1248 = vmatpush2.bf16.xpose.msra.mxu0 0
        %1249 = vmatprep.subr.bf16.mxu0 0
        %1250 = vmatpush2.bf16.xpose.msra.mxu0 0
        %1251 = vmatprep.subr.bf16.mxu0 0
        %1252 = vmatpush2.bf16.xpose.msra.mxu0 0
        %1253 = vmatprep.subr.bf16.mxu0 0
        %1254 = vmatpush2.bf16.xpose.msra.mxu0 0
        %1255 = vmatprep.subr.bf16.mxu0 0
        %1256 = vmatpush2.bf16.xpose.msra.mxu0 0
        %1257 = vmatprep.mubr.bf16.mxu0 0
        %1258 = vmatmul.mubr.bf16.gmra.mxu0 %v1220
        %v1259 = vpop.f32.mrf.mxu0
        %v1260 = vadd.f32 %v1125, %v1259
        %v1261 = vpop.f32.mrf.mxu0
        %v1262 = vpop.f32.mrf.mxu0
        %v1263 = vpop.f32.mrf.mxu0
        %1264 = vdwg.mxu0
        %v1266 = vsel %vm1126, %v1120, 0
        %v1269 = vsel %vm1126, %v1124, 0
        %1271 = vmatprep.subr.bf16.mxu0 0
        %1272 = vmatpush1.bf16.xpose.msra.mxu0 0
        %1273 = vmatprep.subr.bf16.mxu0 0
        %1274 = vmatpush1.bf16.xpose.msra.mxu0 0
        %1275 = vmatprep.subr.bf16.mxu0 0
        %1276 = vmatpush1.bf16.xpose.msra.mxu0 0
        %1277 = vmatprep.subr.bf16.mxu0 0
        %1278 = vmatpush1.bf16.xpose.msra.mxu0 0
        %1279 = vmatprep.subr.bf16.mxu0 0
        %1280 = vmatpush1.bf16.xpose.msra.mxu0 0
        %1281 = vmatprep.subr.bf16.mxu0 0
        %1282 = vmatpush1.bf16.xpose.msra.mxu0 0
        %1283 = vmatprep.subr.bf16.mxu0 0
        %1284 = vmatpush1.bf16.xpose.msra.mxu0 0
        %1285 = vmatprep.subr.bf16.mxu0 0
        %1286 = vmatpush1.bf16.xpose.msra.mxu0 %v1269
        %1287 = vmatprep.subr.bf16.mxu0 0
        %1288 = vmatpush2.bf16.xpose.msra.mxu0 0
        %1289 = vmatprep.subr.bf16.mxu0 0
        %1290 = vmatpush2.bf16.xpose.msra.mxu0 0
        %1291 = vmatprep.subr.bf16.mxu0 0
        %1292 = vmatpush2.bf16.xpose.msra.mxu0 0
        %1293 = vmatprep.subr.bf16.mxu0 0
        %1294 = vmatpush2.bf16.xpose.msra.mxu0 0
        %1295 = vmatprep.subr.bf16.mxu0 0
        %1296 = vmatpush2.bf16.xpose.msra.mxu0 0
        %1297 = vmatprep.subr.bf16.mxu0 0
        %1298 = vmatpush2.bf16.xpose.msra.mxu0 0
        %1299 = vmatprep.subr.bf16.mxu0 0
        %1300 = vmatpush2.bf16.xpose.msra.mxu0 0
        %1301 = vmatprep.subr.bf16.mxu0 0
        %1302 = vmatpush2.bf16.xpose.msra.mxu0 0
        %1303 = vmatprep.mubr.bf16.mxu0 0
        %1304 = vmatmul.mubr.bf16.gmra.mxu0 %v1266
        %v1305 = vpop.f32.mrf.mxu0
        %v1306 = vadd.f32 %v1125, %v1305
        %v1307 = vpop.f32.mrf.mxu0
        %v1308 = vpop.f32.mrf.mxu0
        %v1309 = vpop.f32.mrf.mxu0
        %1310 = vdwg.mxu0
        %v1311 = vsel %vm1126, %v1168, -inf
        %1312 = vmax.xlane.f32.xlu0 %v1311
        %v1313 = vpop.xlane.xlu0 %1312
        %v1314 = vsel %vm1126, %v1214, -inf
        %1315 = vmax.xlane.f32.xlu0 %v1314
        %v1316 = vpop.xlane.xlu0 %1315
        %v1317 = vsel %vm1126, %v1260, -inf
        %1318 = vmax.xlane.f32.xlu0 %v1317
        %v1319 = vpop.xlane.xlu0 %1318
        %v1320 = vsel %vm1126, %v1306, -inf
        %1321 = vmax.xlane.f32.xlu0 %v1320
        %v1322 = vpop.xlane.xlu0 %1321
        %v1323 = vsub.f32 %v1168, %v1313
        %v1324 = vsub.f32 %v1214, %v1316
        %v1325 = vsub.f32 %v1260, %v1319
        %v1326 = vsub.f32 %v1306, %v1322
        %v1327 = vmul.f32 %v1323, 1.442695
        %v1328 = vpow.pop %v1327
        %v1329 = vmul.f32 %v1324, 1.442695
        %v1330 = vpow.pop %v1329
        %v1331 = vmul.f32 %v1325, 1.442695
        %v1332 = vpow.pop %v1331
        %v1333 = vmul.f32 %v1326, 1.442695
        %v1334 = vpow.pop %v1333
        %v1335 = vsel %vm1126, %v1328, 0.0
        %1336 = vadd.xlane.f32.xlu0 %v1335
        %v1337 = vpop.xlane.xlu0 %1336
        %v1338 = vsel %vm1126, %v1330, 0.0
        %1339 = vadd.xlane.f32.xlu0 %v1338
        %v1340 = vpop.xlane.xlu0 %1339
        %v1341 = vsel %vm1126, %v1332, 0.0
        %1342 = vadd.xlane.f32.xlu0 %v1341
        %v1343 = vpop.xlane.xlu0 %1342
        %v1344 = vsel %vm1126, %v1334, 0.0
        %1345 = vadd.xlane.f32.xlu0 %v1344
        %v1346 = vpop.xlane.xlu0 %1345
        %v1347 = vrcp.pop %v1337
        %v1348 = vrcp.pop %v1340
        %v1349 = vrcp.pop %v1343
        %v1350 = vrcp.pop %v1346
        %v1351 = vmul.f32 %v1328, %v1347
        %v1352 = vmul.f32 %v1330, %v1348
        %v1353 = vmul.f32 %v1332, %v1349
        %v1354 = vmul.f32 %v1334, %v1350
        %v1355 = vpack.c.bf16 %v1351, %v1351
        %v1356 = vpack.c.bf16 %v1352, %v1352
        %v1357 = vpack.c.bf16 %v1353, %v1353
        %v1358 = vpack.c.bf16 %v1354, %v1354
        %v1359 = vpack.c.bf16 %v956, %v956
        %v1360 = vpack.c.bf16 %v1008, %v1008
        %v1361 = vpack.c.bf16 %v1060, %v1060
        %v1362 = vpack.c.bf16 %v1112, %v1112
        %v1364 = vsel %vm1126, %v1355, 0
        %vm1366 = vcmask 1043456
        %v1368 = vsel %vm1366, %v1359, 0
        %1370 = vmatprep.subr.bf16.mxu0 0
        %1371 = vmatpush1.bf16.msra.mxu0 0
        %1372 = vmatprep.subr.bf16.mxu0 0
        %1373 = vmatpush1.bf16.msra.mxu0 0
        %1374 = vmatprep.subr.bf16.mxu0 0
        %1375 = vmatpush1.bf16.msra.mxu0 0
        %1376 = vmatprep.subr.bf16.mxu0 0
        %1377 = vmatpush1.bf16.msra.mxu0 0
        %1378 = vmatprep.subr.bf16.mxu0 0
        %1379 = vmatpush1.bf16.msra.mxu0 0
        %1380 = vmatprep.subr.bf16.mxu0 0
        %1381 = vmatpush1.bf16.msra.mxu0 0
        %1382 = vmatprep.subr.bf16.mxu0 0
        %1383 = vmatpush1.bf16.msra.mxu0 0
        %1384 = vmatprep.subr.bf16.mxu0 0
        %1385 = vmatpush1.bf16.msra.mxu0 %v1368
        %1386 = vmatprep.subr.bf16.mxu0 0
        %1387 = vmatpush2.bf16.msra.mxu0 0
        %1388 = vmatprep.subr.bf16.mxu0 0
        %1389 = vmatpush2.bf16.msra.mxu0 0
        %1390 = vmatprep.subr.bf16.mxu0 0
        %1391 = vmatpush2.bf16.msra.mxu0 0
        %1392 = vmatprep.subr.bf16.mxu0 0
        %1393 = vmatpush2.bf16.msra.mxu0 0
        %1394 = vmatprep.subr.bf16.mxu0 0
        %1395 = vmatpush2.bf16.msra.mxu0 0
        %1396 = vmatprep.subr.bf16.mxu0 0
        %1397 = vmatpush2.bf16.msra.mxu0 0
        %1398 = vmatprep.subr.bf16.mxu0 0
        %1399 = vmatpush2.bf16.msra.mxu0 0
        %1400 = vmatprep.subr.bf16.mxu0 0
        %1401 = vmatpush2.bf16.msra.mxu0 0
        %1402 = vmatprep.mubr.bf16.mxu0 0
        %1403 = vmatmul.mubr.bf16.gmra.mxu0 %v1364
        %v1404 = vpop.f32.mrf.mxu0
        %v1405 = vadd.f32 0.0, %v1404
        %v1406 = vpop.f32.mrf.mxu0
        %v1407 = vpop.f32.mrf.mxu0
        %v1408 = vpop.f32.mrf.mxu0
        %1409 = vdwg.mxu0
        %v1411 = vsel %vm1126, %v1356, 0
        %v1414 = vsel %vm1366, %v1360, 0
        %1416 = vmatprep.subr.bf16.mxu0 0
        %1417 = vmatpush1.bf16.msra.mxu0 0
        %1418 = vmatprep.subr.bf16.mxu0 0
        %1419 = vmatpush1.bf16.msra.mxu0 0
        %1420 = vmatprep.subr.bf16.mxu0 0
        %1421 = vmatpush1.bf16.msra.mxu0 0
        %1422 = vmatprep.subr.bf16.mxu0 0
        %1423 = vmatpush1.bf16.msra.mxu0 0
        %1424 = vmatprep.subr.bf16.mxu0 0
        %1425 = vmatpush1.bf16.msra.mxu0 0
        %1426 = vmatprep.subr.bf16.mxu0 0
        %1427 = vmatpush1.bf16.msra.mxu0 0
        %1428 = vmatprep.subr.bf16.mxu0 0
        %1429 = vmatpush1.bf16.msra.mxu0 0
        %1430 = vmatprep.subr.bf16.mxu0 0
        %1431 = vmatpush1.bf16.msra.mxu0 %v1414
        %1432 = vmatprep.subr.bf16.mxu0 0
        %1433 = vmatpush2.bf16.msra.mxu0 0
        %1434 = vmatprep.subr.bf16.mxu0 0
        %1435 = vmatpush2.bf16.msra.mxu0 0
        %1436 = vmatprep.subr.bf16.mxu0 0
        %1437 = vmatpush2.bf16.msra.mxu0 0
        %1438 = vmatprep.subr.bf16.mxu0 0
        %1439 = vmatpush2.bf16.msra.mxu0 0
        %1440 = vmatprep.subr.bf16.mxu0 0
        %1441 = vmatpush2.bf16.msra.mxu0 0
        %1442 = vmatprep.subr.bf16.mxu0 0
        %1443 = vmatpush2.bf16.msra.mxu0 0
        %1444 = vmatprep.subr.bf16.mxu0 0
        %1445 = vmatpush2.bf16.msra.mxu0 0
        %1446 = vmatprep.subr.bf16.mxu0 0
        %1447 = vmatpush2.bf16.msra.mxu0 0
        %1448 = vmatprep.mubr.bf16.mxu0 0
        %1449 = vmatmul.mubr.bf16.gmra.mxu0 %v1411
        %v1450 = vpop.f32.mrf.mxu0
        %v1451 = vadd.f32 0.0, %v1450
        %v1452 = vpop.f32.mrf.mxu0
        %v1453 = vpop.f32.mrf.mxu0
        %v1454 = vpop.f32.mrf.mxu0
        %1455 = vdwg.mxu0
        %v1457 = vsel %vm1126, %v1357, 0
        %v1460 = vsel %vm1366, %v1361, 0
        %1462 = vmatprep.subr.bf16.mxu0 0
        %1463 = vmatpush1.bf16.msra.mxu0 0
        %1464 = vmatprep.subr.bf16.mxu0 0
        %1465 = vmatpush1.bf16.msra.mxu0 0
        %1466 = vmatprep.subr.bf16.mxu0 0
        %1467 = vmatpush1.bf16.msra.mxu0 0
        %1468 = vmatprep.subr.bf16.mxu0 0
        %1469 = vmatpush1.bf16.msra.mxu0 0
        %1470 = vmatprep.subr.bf16.mxu0 0
        %1471 = vmatpush1.bf16.msra.mxu0 0
        %1472 = vmatprep.subr.bf16.mxu0 0
        %1473 = vmatpush1.bf16.msra.mxu0 0
        %1474 = vmatprep.subr.bf16.mxu0 0
        %1475 = vmatpush1.bf16.msra.mxu0 0
        %1476 = vmatprep.subr.bf16.mxu0 0
        %1477 = vmatpush1.bf16.msra.mxu0 %v1460
        %1478 = vmatprep.subr.bf16.mxu0 0
        %1479 = vmatpush2.bf16.msra.mxu0 0
        %1480 = vmatprep.subr.bf16.mxu0 0
        %1481 = vmatpush2.bf16.msra.mxu0 0
        %1482 = vmatprep.subr.bf16.mxu0 0
        %1483 = vmatpush2.bf16.msra.mxu0 0
        %1484 = vmatprep.subr.bf16.mxu0 0
        %1485 = vmatpush2.bf16.msra.mxu0 0
        %1486 = vmatprep.subr.bf16.mxu0 0
        %1487 = vmatpush2.bf16.msra.mxu0 0
        %1488 = vmatprep.subr.bf16.mxu0 0
        %1489 = vmatpush2.bf16.msra.mxu0 0
        %1490 = vmatprep.subr.bf16.mxu0 0
        %1491 = vmatpush2.bf16.msra.mxu0 0
        %1492 = vmatprep.subr.bf16.mxu0 0
        %1493 = vmatpush2.bf16.msra.mxu0 0
        %1494 = vmatprep.mubr.bf16.mxu0 0
        %1495 = vmatmul.mubr.bf16.gmra.mxu0 %v1457
        %v1496 = vpop.f32.mrf.mxu0
        %v1497 = vadd.f32 0.0, %v1496
        %v1498 = vpop.f32.mrf.mxu0
        %v1499 = vpop.f32.mrf.mxu0
        %v1500 = vpop.f32.mrf.mxu0
        %1501 = vdwg.mxu0
        %v1503 = vsel %vm1126, %v1358, 0
        %v1506 = vsel %vm1366, %v1362, 0
        %1508 = vmatprep.subr.bf16.mxu0 0
        %1509 = vmatpush1.bf16.msra.mxu0 0
        %1510 = vmatprep.subr.bf16.mxu0 0
        %1511 = vmatpush1.bf16.msra.mxu0 0
        %1512 = vmatprep.subr.bf16.mxu0 0
        %1513 = vmatpush1.bf16.msra.mxu0 0
        %1514 = vmatprep.subr.bf16.mxu0 0
        %1515 = vmatpush1.bf16.msra.mxu0 0
        %1516 = vmatprep.subr.bf16.mxu0 0
        %1517 = vmatpush1.bf16.msra.mxu0 0
        %1518 = vmatprep.subr.bf16.mxu0 0
        %1519 = vmatpush1.bf16.msra.mxu0 0
        %1520 = vmatprep.subr.bf16.mxu0 0
        %1521 = vmatpush1.bf16.msra.mxu0 0
        %1522 = vmatprep.subr.bf16.mxu0 0
        %1523 = vmatpush1.bf16.msra.mxu0 %v1506
        %1524 = vmatprep.subr.bf16.mxu0 0
        %1525 = vmatpush2.bf16.msra.mxu0 0
        %1526 = vmatprep.subr.bf16.mxu0 0
        %1527 = vmatpush2.bf16.msra.mxu0 0
        %1528 = vmatprep.subr.bf16.mxu0 0
        %1529 = vmatpush2.bf16.msra.mxu0 0
        %1530 = vmatprep.subr.bf16.mxu0 0
        %1531 = vmatpush2.bf16.msra.mxu0 0
        %1532 = vmatprep.subr.bf16.mxu0 0
        %1533 = vmatpush2.bf16.msra.mxu0 0
        %1534 = vmatprep.subr.bf16.mxu0 0
        %1535 = vmatpush2.bf16.msra.mxu0 0
        %1536 = vmatprep.subr.bf16.mxu0 0
        %1537 = vmatpush2.bf16.msra.mxu0 0
        %1538 = vmatprep.subr.bf16.mxu0 0
        %1539 = vmatpush2.bf16.msra.mxu0 0
        %1540 = vmatprep.mubr.bf16.mxu0 0
        %1541 = vmatmul.mubr.bf16.gmra.mxu0 %v1503
        %v1542 = vpop.f32.mrf.mxu0
        %v1543 = vadd.f32 0.0, %v1542
        %v1544 = vpop.f32.mrf.mxu0
        %v1545 = vpop.f32.mrf.mxu0
        %v1546 = vpop.f32.mrf.mxu0
        %1547 = vdwg.mxu0
        %v1548 = vpack.c.bf16 %v1405, %v1405
        %v1549 = vpack.c.bf16 %v1451, %v1451
        %v1550 = vpack.c.bf16 %v1497, %v1497
        %v1551 = vpack.c.bf16 %v1543, %v1543
        %v1552 = vld [vmem:[%s8] sm:$0xf]
        %v1553 = vld [vmem:[%s8 + $0x4] sm:$0xf]
        %v1554 = vld [vmem:[%s8 + $0x8] sm:$0xf]
        %v1555 = vld [vmem:[%s8 + $0xc] sm:$0xf]
        %v1557 = vsel %vm1126, %v1548, 0
        %v1560 = vsel %vm1366, %v1552, 0
        %1562 = vmatprep.subr.bf16.mxu0 0
        %1563 = vmatpush1.bf16.msra.mxu0 0
        %1564 = vmatprep.subr.bf16.mxu0 0
        %1565 = vmatpush1.bf16.msra.mxu0 0
        %1566 = vmatprep.subr.bf16.mxu0 0
        %1567 = vmatpush1.bf16.msra.mxu0 0
        %1568 = vmatprep.subr.bf16.mxu0 0
        %1569 = vmatpush1.bf16.msra.mxu0 0
        %1570 = vmatprep.subr.bf16.mxu0 0
        %1571 = vmatpush1.bf16.msra.mxu0 0
        %1572 = vmatprep.subr.bf16.mxu0 0
        %1573 = vmatpush1.bf16.msra.mxu0 0
        %1574 = vmatprep.subr.bf16.mxu0 0
        %1575 = vmatpush1.bf16.msra.mxu0 0
        %1576 = vmatprep.subr.bf16.mxu0 0
        %1577 = vmatpush1.bf16.msra.mxu0 %v1560
        %1578 = vmatprep.subr.bf16.mxu0 0
        %1579 = vmatpush2.bf16.msra.mxu0 0
        %1580 = vmatprep.subr.bf16.mxu0 0
        %1581 = vmatpush2.bf16.msra.mxu0 0
        %1582 = vmatprep.subr.bf16.mxu0 0
        %1583 = vmatpush2.bf16.msra.mxu0 0
        %1584 = vmatprep.subr.bf16.mxu0 0
        %1585 = vmatpush2.bf16.msra.mxu0 0
        %1586 = vmatprep.subr.bf16.mxu0 0
        %1587 = vmatpush2.bf16.msra.mxu0 0
        %1588 = vmatprep.subr.bf16.mxu0 0
        %1589 = vmatpush2.bf16.msra.mxu0 0
        %1590 = vmatprep.subr.bf16.mxu0 0
        %1591 = vmatpush2.bf16.msra.mxu0 0
        %1592 = vmatprep.subr.bf16.mxu0 0
        %1593 = vmatpush2.bf16.msra.mxu0 0
        %1594 = vmatprep.mubr.bf16.mxu0 0
        %1595 = vmatmul.mubr.bf16.gmra.mxu0 %v1557
        %v1596 = vpop.f32.mrf.mxu0
        %v1597 = vadd.f32 0.0, %v1596
        %v1598 = vpop.f32.mrf.mxu0
        %v1599 = vpop.f32.mrf.mxu0
        %v1600 = vpop.f32.mrf.mxu0
        %1601 = vdwg.mxu0
        %v1603 = vsel %vm1126, %v1549, 0
        %v1606 = vsel %vm1366, %v1553, 0
        %1608 = vmatprep.subr.bf16.mxu0 0
        %1609 = vmatpush1.bf16.msra.mxu0 0
        %1610 = vmatprep.subr.bf16.mxu0 0
        %1611 = vmatpush1.bf16.msra.mxu0 0
        %1612 = vmatprep.subr.bf16.mxu0 0
        %1613 = vmatpush1.bf16.msra.mxu0 0
        %1614 = vmatprep.subr.bf16.mxu0 0
        %1615 = vmatpush1.bf16.msra.mxu0 0
        %1616 = vmatprep.subr.bf16.mxu0 0
        %1617 = vmatpush1.bf16.msra.mxu0 0
        %1618 = vmatprep.subr.bf16.mxu0 0
        %1619 = vmatpush1.bf16.msra.mxu0 0
        %1620 = vmatprep.subr.bf16.mxu0 0
        %1621 = vmatpush1.bf16.msra.mxu0 0
        %1622 = vmatprep.subr.bf16.mxu0 0
        %1623 = vmatpush1.bf16.msra.mxu0 %v1606
        %1624 = vmatprep.subr.bf16.mxu0 0
        %1625 = vmatpush2.bf16.msra.mxu0 0
        %1626 = vmatprep.subr.bf16.mxu0 0
        %1627 = vmatpush2.bf16.msra.mxu0 0
        %1628 = vmatprep.subr.bf16.mxu0 0
        %1629 = vmatpush2.bf16.msra.mxu0 0
        %1630 = vmatprep.subr.bf16.mxu0 0
        %1631 = vmatpush2.bf16.msra.mxu0 0
        %1632 = vmatprep.subr.bf16.mxu0 0
        %1633 = vmatpush2.bf16.msra.mxu0 0
        %1634 = vmatprep.subr.bf16.mxu0 0
        %1635 = vmatpush2.bf16.msra.mxu0 0
        %1636 = vmatprep.subr.bf16.mxu0 0
        %1637 = vmatpush2.bf16.msra.mxu0 0
        %1638 = vmatprep.subr.bf16.mxu0 0
        %1639 = vmatpush2.bf16.msra.mxu0 0
        %1640 = vmatprep.mubr.bf16.mxu0 0
        %1641 = vmatmul.mubr.bf16.gmra.mxu0 %v1603
        %v1642 = vpop.f32.mrf.mxu0
        %v1643 = vadd.f32 0.0, %v1642
        %v1644 = vpop.f32.mrf.mxu0
        %v1645 = vpop.f32.mrf.mxu0
        %v1646 = vpop.f32.mrf.mxu0
        %1647 = vdwg.mxu0
        %v1649 = vsel %vm1126, %v1550, 0
        %v1652 = vsel %vm1366, %v1554, 0
        %1654 = vmatprep.subr.bf16.mxu0 0
        %1655 = vmatpush1.bf16.msra.mxu0 0
        %1656 = vmatprep.subr.bf16.mxu0 0
        %1657 = vmatpush1.bf16.msra.mxu0 0
        %1658 = vmatprep.subr.bf16.mxu0 0
        %1659 = vmatpush1.bf16.msra.mxu0 0
        %1660 = vmatprep.subr.bf16.mxu0 0
        %1661 = vmatpush1.bf16.msra.mxu0 0
        %1662 = vmatprep.subr.bf16.mxu0 0
        %1663 = vmatpush1.bf16.msra.mxu0 0
        %1664 = vmatprep.subr.bf16.mxu0 0
        %1665 = vmatpush1.bf16.msra.mxu0 0
        %1666 = vmatprep.subr.bf16.mxu0 0
        %1667 = vmatpush1.bf16.msra.mxu0 0
        %1668 = vmatprep.subr.bf16.mxu0 0
        %1669 = vmatpush1.bf16.msra.mxu0 %v1652
        %1670 = vmatprep.subr.bf16.mxu0 0
        %1671 = vmatpush2.bf16.msra.mxu0 0
        %1672 = vmatprep.subr.bf16.mxu0 0
        %1673 = vmatpush2.bf16.msra.mxu0 0
        %1674 = vmatprep.subr.bf16.mxu0 0
        %1675 = vmatpush2.bf16.msra.mxu0 0
        %1676 = vmatprep.subr.bf16.mxu0 0
        %1677 = vmatpush2.bf16.msra.mxu0 0
        %1678 = vmatprep.subr.bf16.mxu0 0
        %1679 = vmatpush2.bf16.msra.mxu0 0
        %1680 = vmatprep.subr.bf16.mxu0 0
        %1681 = vmatpush2.bf16.msra.mxu0 0
        %1682 = vmatprep.subr.bf16.mxu0 0
        %1683 = vmatpush2.bf16.msra.mxu0 0
        %1684 = vmatprep.subr.bf16.mxu0 0
        %1685 = vmatpush2.bf16.msra.mxu0 0
        %1686 = vmatprep.mubr.bf16.mxu0 0
        %1687 = vmatmul.mubr.bf16.gmra.mxu0 %v1649
        %v1688 = vpop.f32.mrf.mxu0
        %v1689 = vadd.f32 0.0, %v1688
        %v1690 = vpop.f32.mrf.mxu0
        %v1691 = vpop.f32.mrf.mxu0
        %v1692 = vpop.f32.mrf.mxu0
        %1693 = vdwg.mxu0
        %v1695 = vsel %vm1126, %v1551, 0
        %v1698 = vsel %vm1366, %v1555, 0
        %1700 = vmatprep.subr.bf16.mxu0 0
        %1701 = vmatpush1.bf16.msra.mxu0 0
        %1702 = vmatprep.subr.bf16.mxu0 0
        %1703 = vmatpush1.bf16.msra.mxu0 0
        %1704 = vmatprep.subr.bf16.mxu0 0
        %1705 = vmatpush1.bf16.msra.mxu0 0
        %1706 = vmatprep.subr.bf16.mxu0 0
        %1707 = vmatpush1.bf16.msra.mxu0 0
        %1708 = vmatprep.subr.bf16.mxu0 0
        %1709 = vmatpush1.bf16.msra.mxu0 0
        %1710 = vmatprep.subr.bf16.mxu0 0
        %1711 = vmatpush1.bf16.msra.mxu0 0
        %1712 = vmatprep.subr.bf16.mxu0 0
        %1713 = vmatpush1.bf16.msra.mxu0 0
        %1714 = vmatprep.subr.bf16.mxu0 0
        %1715 = vmatpush1.bf16.msra.mxu0 %v1698
        %1716 = vmatprep.subr.bf16.mxu0 0
        %1717 = vmatpush2.bf16.msra.mxu0 0
        %1718 = vmatprep.subr.bf16.mxu0 0
        %1719 = vmatpush2.bf16.msra.mxu0 0
        %1720 = vmatprep.subr.bf16.mxu0 0
        %1721 = vmatpush2.bf16.msra.mxu0 0
        %1722 = vmatprep.subr.bf16.mxu0 0
        %1723 = vmatpush2.bf16.msra.mxu0 0
        %1724 = vmatprep.subr.bf16.mxu0 0
        %1725 = vmatpush2.bf16.msra.mxu0 0
        %1726 = vmatprep.subr.bf16.mxu0 0
        %1727 = vmatpush2.bf16.msra.mxu0 0
        %1728 = vmatprep.subr.bf16.mxu0 0
        %1729 = vmatpush2.bf16.msra.mxu0 0
        %1730 = vmatprep.subr.bf16.mxu0 0
        %1731 = vmatpush2.bf16.msra.mxu0 0
        %1732 = vmatprep.mubr.bf16.mxu0 0
        %1733 = vmatmul.mubr.bf16.gmra.mxu0 %v1695
        %v1734 = vpop.f32.mrf.mxu0
        %v1735 = vadd.f32 0.0, %v1734
        %v1736 = vpop.f32.mrf.mxu0
        %v1737 = vpop.f32.mrf.mxu0
        %v1738 = vpop.f32.mrf.mxu0
        %1739 = vdwg.mxu0
        %v1740 = vsel %vm413, %v1597, 0.0
        %v1741 = vsel %vm413, %v1643, 0.0
        %v1742 = vadd.f32 %v1740, %v1741
        %v1743 = vsel %vm413, %v1689, 0.0
        %v1744 = vadd.f32 %v1742, %v1743
        %v1745 = vsel %vm413, %v1735, 0.0
        %v1746 = vadd.f32 %v1744, %v1745
        %v1747 = vld [vmem:[%s9] sm:$0x1]
        %v1749 = vlaneseq
        %v1750 = vshrl.u32 %v1749, 7
        %v1751 = vsub.s32 0, %v1750
        %v1752 = vrot.slane %v1747, %v1751
        %v1754 = vadd.f32 %v1746, %v1752
        %1755 = vst.msk [vmem:[%s350] sm:$0xff] %vm413, %v1754
        %s1756 = sand.u32 %s247, 1
        %s1757 = scalar_lea.sflag [#allocation3], %s1756
        %s1758 = sand.u32 %s247, 1
        %s1759 = smul.addr %s1758, 8
        %s1760 = scalar_lea.vmem [#allocation2], %s1759
        // Predicated region
        $region61: #{tpu_custom_call.1} parent=59 // pred_check
          %p1761 = pneg %p257
        $region62: #{tpu_custom_call.1} parent=59 // pred_check_branch
          %1763 = sbr.rel (%p1761) target = $region64
        $region63: #{tpu_custom_call.1} parent=59 // pred_region
          %s1765 = ssub.s32 128, 128
          %1766 = vsyncadd %s1757, %s1765
          %s1767 = smul.addr %s24, 128
          %s1768 = scalar_lea.hbm %s10, %s1767
          %s1770 = sshll.u32 %s1760, 4
          %s1771 = int_to_ptr.vmem [resolvable:$true] %s1770
          %1773 = dma.vmem_to_hbm [thread:$0]  %s1771, 128, %s1768, %s1757
        $region64: #{tpu_custom_call.1} parent=59 // pred_fallthru
          _
      $region60: #{tpu_custom_call.1} parent=5 // pred_fallthru
        _
      %p1774 = scmp.le.s32.totalorder 2, %s19
      // Predicated region
      $region65: #{tpu_custom_call.1} parent=5 // pred_check
        %p1775 = pneg %p1774
      $region66: #{tpu_custom_call.1} parent=5 // pred_check_branch
        %1777 = sbr.rel (%p1775) target = $region68
      $region67: #{tpu_custom_call.1} parent=5 // pred_region
        %s1778 = ssub.s32 %s19, 2
        // Predicated region
        $region69: #{tpu_custom_call.1} parent=67 // pred_check
          %p1779 = pneg %p263
        $region70: #{tpu_custom_call.1} parent=67 // pred_check_branch
          %1781 = sbr.rel (%p1779) target = $region72
        $region71: #{tpu_custom_call.1} parent=67 // pred_region
          %s1782 = sand.u32 %s248, 1
          %s1783 = scalar_lea.sflag [#allocation3], %s1782
          %s1784 = sand.u32 %s248, 1
          %s1785 = smul.addr %s1784, 8
          %s1786 = scalar_lea.vmem [#allocation2], %s1785
          %1787 = dma.done %s1783, 128
        $region72: #{tpu_custom_call.1} parent=67 // pred_fallthru
          _
      $region68: #{tpu_custom_call.1} parent=5 // pred_fallthru
        _
    $region6: #{tpu_custom_call.1} parent=1 // loop_footer
      %s23 = sadd.s32 1, %s19
    $region7: #{tpu_custom_call.1} parent=1 // loop_footer_branch
      %18 = sbr.rel target = $region3
    $region8: #{tpu_custom_call.1} parent=1 // loop_exit
      _
    %1788 = vsyncpa [#allocation3], 1
    %s1789 = scalar_lea.sflag [#allocation3], 1
    %1790 = vsyncpa %s1789, 1

</llo_original>
